<compile_context>
chip_gen: v7x
topology: tpu7x:2x2x1
jax: 0.10.0
libtpu: 0.0.40
codegen_flags: <defaults>
</compile_context>

<pallas_src>
import functools

import numpy as np
import jax
import jax.numpy as jnp
from jax.experimental import pallas as pl
from jax.experimental.pallas import tpu as pltpu

_BN_EPS = 1e-5   # torch.nn.BatchNorm1d default eps
_THIRD_DIM = 10  # hard-coded "10" inside DenseTransformerBlock


# --------------------------------------------------------------------------- #
# Pallas kernel: fused forward of all branches / layers on one batch tile.
# Activations are feature-major: (feature, tile_b), batch in lanes.
# --------------------------------------------------------------------------- #
def _mbm_kernel(x_ref, w1x_ref, w1o_ref, b1_ref, ww_ref, wd1_ref, bd1_ref,
                wd2_ref, bd2_ref, w3_ref, c_ref, o_ref, *, n_branch, layer_num):
    xT = x_ref[...]                                    # (D_total, tile_b) f32
    tile_b = xT.shape[1]
    total = jnp.zeros((1, tile_b), jnp.float32)

    for b in range(n_branch):                          # static python loops
        prev = []                                      # per-layer (1, tile_b) outs
        for i in range(layer_num):
            # seq_1: Linear(in_dim_b + i, first_dim) + Tanh.
            # x-part: dense matmul against a zero-padded (F, D_total) slab.
            o = jnp.dot(w1x_ref[b, i], xT, preferred_element_type=jnp.float32)
            o = o + b1_ref[b, i]                       # (F, 1) broadcast
            # torch.cat feedback columns -> rank-1 broadcast terms.
            for j in range(i):
                o = o + w1o_ref[b, i * layer_num + j] * prev[j]   # (F,1)*(1,tb)
            o = jnp.tanh(o)                            # (F, tile_b)

            # wide_block_1: Linear(first_dim, 1); bias folded into c.
            o1 = jnp.sum(o * ww_ref[b, i], axis=0, keepdims=True)     # (1, tb)

            # deep_block_1 / deep_block_2: Linear + BatchNorm(folded) + Tanh.
            d1 = jnp.tanh(
                jnp.dot(wd1_ref[b, i], o, preferred_element_type=jnp.float32)
                + bd1_ref[b, i])                       # (second_dim, tb)
            d2 = jnp.tanh(
                jnp.dot(wd2_ref[b, i], d1, preferred_element_type=jnp.float32)
                + bd2_ref[b, i])                       # (10, tb)

            # deep_block_3: BatchNorm(folded) + Linear(10, 1); bias folded into c.
            o2 = jnp.sum(d2 * w3_ref[b, i], axis=0, keepdims=True)    # (1, tb)

            out = o1 + o2 + c_ref[b, i]                # (1, tile_b)
            prev.append(out)

        total = total + prev[-1]                       # branch out = last layer

    # torch.mean over concatenated branch outputs (dim=1, keepdim=True).
    o_ref[...] = (total * (1.0 / n_branch)).astype(o_ref.dtype)


# --------------------------------------------------------------------------- #
# Wrapper
# --------------------------------------------------------------------------- #
def _choose_batch_tile(b_pad):
    """b_pad is a multiple of 128; return a multiple of 128 that divides it."""
    tile = min(b_pad, 1024)
    while b_pad % tile != 0:
        tile -= 128
    # Prefer >= 2 grid steps (v7x dual-TensorCore sharding) when possible.
    if b_pad // tile < 2 and b_pad >= 256 and (b_pad // 2) % 128 == 0:
        tile = b_pad // 2
    return tile


def multibranch_forward(packed, x):
    """Fused MultiBranchModel forward.  x: (B, sum(input_dim_lst)) float32."""
    n_branch, layer_num, _, d_total = packed["w1x"].shape
    batch = x.shape[0]
    assert x.shape[1] == d_total

    b_pad = ((batch + 127) // 128) * 128               # lane quantum
    tile_b = _choose_batch_tile(b_pad)

    xT = x.T                                           # (D_total, B) — tiny XLA op
    if b_pad != batch:
        xT = jnp.pad(xT, ((0, 0), (0, b_pad - batch)))

    weight_names = ("w1x", "w1o", "b1", "ww", "wd1", "bd1", "wd2", "bd2", "w3", "c")
    weights = [packed[k] for k in weight_names]

    kernel = functools.partial(_mbm_kernel, n_branch=n_branch, layer_num=layer_num)

    in_specs = [pl.BlockSpec((d_total, tile_b), lambda r: (0, r))]
    for w in weights:
        # Full-array, VMEM-resident weight blocks (same block every grid step).
        in_specs.append(pl.BlockSpec(w.shape, lambda r, nd=w.ndim: (0,) * nd))

    out = pl.pallas_call(
        kernel,
        out_shape=jax.ShapeDtypeStruct((1, b_pad), jnp.float32),
        grid_spec=pltpu.PrefetchScalarGridSpec(
            num_scalar_prefetch=0,
            grid=(b_pad // tile_b,),
            in_specs=in_specs,
            out_specs=pl.BlockSpec((1, tile_b), lambda r: (0, r)),
        ),
        compiler_params=pltpu.CompilerParams(
            dimension_semantics=("parallel",),
        ),
    )(xT, *weights)

    return out[0, :batch].reshape(batch, 1)


# --------------------------------------------------------------------------- #
# Parameter construction (simulating the torch module in eval mode) + folding
# --------------------------------------------------------------------------- #
def _linear_init(key, in_dim, out_dim):
    kw, kb = jax.random.split(key)
    bound = float(1.0 / np.sqrt(in_dim))
    w = jax.random.uniform(kw, (out_dim, in_dim), jnp.float32, -bound, bound)
    b = jax.random.uniform(kb, (out_dim,), jnp.float32, -bound, bound)
    return w, b


def _bn_init(key, dim):
    kg, kb, km, kv = jax.random.split(key, 4)
    return dict(
        gamma=jax.random.uniform(kg, (dim,), jnp.float32, 0.5, 1.5),
        beta=0.1 * jax.random.normal(kb, (dim,), jnp.float32),
        mean=0.1 * jax.random.normal(km, (dim,), jnp.float32),
        var=jax.random.uniform(kv, (dim,), jnp.float32, 0.5, 1.5),
    )


def init_raw_params(key, input_dim_lst, first_dim, second_dim, layer_num):
    raw = []
    for din in input_dim_lst:
        branch = []
        for i in range(layer_num):
            keys = jax.random.split(key, 9)
            key = keys[0]
            w1, b1 = _linear_init(keys[1], din + i, first_dim)
            ww, bw = _linear_init(keys[2], first_dim, 1)
            wd1, bd1 = _linear_init(keys[3], first_dim, second_dim)
            wd2, bd2 = _linear_init(keys[4], second_dim, _THIRD_DIM)
            w3, b3 = _linear_init(keys[5], _THIRD_DIM, 1)
            branch.append(dict(
                w1=w1, b1=b1, ww=ww, bw=bw,
                wd1=wd1, bd1=bd1, bn1=_bn_init(keys[6], second_dim),
                wd2=wd2, bd2=bd2, bn2=_bn_init(keys[7], _THIRD_DIM),
                bn3=_bn_init(keys[8], _THIRD_DIM), w3=w3, b3=b3,
            ))
        raw.append(branch)
    return raw


def fold_params(raw, input_dim_lst, first_dim, second_dim, layer_num):
    """Fold BN (eval) into Linears and pack into transposed (out, in) slabs."""
    nb, nl = len(input_dim_lst), layer_num
    d_total = int(sum(input_dim_lst))
    offs = [0]
    for d in input_dim_lst:
        offs.append(offs[-1] + int(d))

    w1x = np.zeros((nb, nl, first_dim, d_total), np.float32)
    w1o = np.zeros((nb, nl * nl, first_dim, 1), np.float32)
    b1 = np.zeros((nb, nl, first_dim, 1), np.float32)
    ww = np.zeros((nb, nl, first_dim, 1), np.float32)
    wd1 = np.zeros((nb, nl, second_dim, first_dim), np.float32)
    bd1 = np.zeros((nb, nl, second_dim, 1), np.float32)
    wd2 = np.zeros((nb, nl, _THIRD_DIM, second_dim), np.float32)
    bd2 = np.zeros((nb, nl, _THIRD_DIM, 1), np.float32)
    w3 = np.zeros((nb, nl, _THIRD_DIM, 1), np.float32)
    c = np.zeros((nb, nl, 1, 1), np.float32)

    for b in range(nb):
        p0, din = offs[b], int(input_dim_lst[b])
        for i in range(nl):
            bp = {k: (np.asarray(v) if not isinstance(v, dict)
                      else {kk: np.asarray(vv) for kk, vv in v.items()})
                  for k, v in raw[b][i].items()}
            W1 = bp["w1"]                                  # (F, din + i)
            w1x[b, i, :, p0:p0 + din] = W1[:, :din]
            for j in range(i):
                w1o[b, i * nl + j, :, 0] = W1[:, din + j]
            b1[b, i, :, 0] = bp["b1"]
            ww[b, i, :, 0] = bp["ww"][0]

            s1 = bp["bn1"]["gamma"] / np.sqrt(bp["bn1"]["var"] + _BN_EPS)
            wd1[b, i] = bp["wd1"] * s1[:, None]
            bd1[b, i, :, 0] = (bp["bd1"] - bp["bn1"]["mean"]) * s1 + bp["bn1"]["beta"]

            s2 = bp["bn2"]["gamma"] / np.sqrt(bp["bn2"]["var"] + _BN_EPS)
            wd2[b, i] = bp["wd2"] * s2[:, None]
            bd2[b, i, :, 0] = (bp["bd2"] - bp["bn2"]["mean"]) * s2 + bp["bn2"]["beta"]

            s3 = bp["bn3"]["gamma"] / np.sqrt(bp["bn3"]["var"] + _BN_EPS)
            t3 = bp["bn3"]["beta"] - bp["bn3"]["mean"] * s3
            w3[b, i, :, 0] = bp["w3"][0] * s3
            c[b, i, 0, 0] = (float(bp["bw"][0]) + float(t3 @ bp["w3"][0])
                             + float(bp["b3"][0]))

    packed = dict(w1x=w1x, w1o=w1o, b1=b1, ww=ww, wd1=wd1, bd1=bd1,
                  wd2=wd2, bd2=bd2, w3=w3, c=c)
    return {k: jnp.asarray(v) for k, v in packed.items()}


# --------------------------------------------------------------------------- #
# Pure-JAX reference (mirrors the torch forward, eval mode)
# --------------------------------------------------------------------------- #
def _bn_eval(y, p):
    return (y - p["mean"]) / jnp.sqrt(p["var"] + _BN_EPS) * p["gamma"] + p["beta"]


def _block_ref(bp, x):
    o = jnp.tanh(x @ bp["w1"].T + bp["b1"])
    o1 = o @ bp["ww"].T + bp["bw"]
    d1 = jnp.tanh(_bn_eval(o @ bp["wd1"].T + bp["bd1"], bp["bn1"]))
    d2 = jnp.tanh(_bn_eval(d1 @ bp["wd2"].T + bp["bd2"], bp["bn2"]))
    o2 = _bn_eval(d2, bp["bn3"]) @ bp["w3"].T + bp["b3"]
    return o1 + o2


def reference_forward(raw, x, input_dim_lst, layer_num):
    offs = [0]
    for d in input_dim_lst:
        offs.append(offs[-1] + int(d))
    res = []
    for b in range(len(input_dim_lst)):
        inp = x[:, offs[b]:offs[b + 1]]
        out = None
        for i in range(layer_num):
            out = _block_ref(raw[b][i], inp)
            inp = jnp.concatenate([inp, out], axis=1)
        res.append(out)
    res = jnp.concatenate(res, axis=1)
    return jnp.mean(res, axis=1, keepdims=True)


# --------------------------------------------------------------------------- #
if __name__ == "__main__":
    input_dim_lst = [8, 12]
    first_dim, second_dim, layer_num = 30, 20, 2
    batch = 64

    key = jax.random.PRNGKey(0)
    k_params, k_x = jax.random.split(key)

    raw = init_raw_params(k_params, input_dim_lst, first_dim, second_dim, layer_num)
    packed = fold_params(raw, input_dim_lst, first_dim, second_dim, layer_num)

    x = jax.random.normal(k_x, (batch, int(sum(input_dim_lst))), dtype=jnp.float32)

    y = multibranch_forward(packed, x)
    jax.block_until_ready(y)

    y_ref = reference_forward(raw, x, input_dim_lst, layer_num)
    assert y.shape == (batch, 1) and y.dtype == jnp.float32
    assert jnp.allclose(y, y_ref, atol=1e-2, rtol=1e-2), \
        float(jnp.max(jnp.abs(y - y_ref)))

    print("KERNEL_OK")
</pallas_src>

<mosaic_0001>
module attributes {stable_mosaic.version = 11 : i64} {
  func.func @_mbm_kernel(%arg0: i32, %arg1: memref<20x128xf32, #tpu.memory_space<vmem>>, %arg2: memref<2x2x30x20xf32, #tpu.memory_space<vmem>>, %arg3: memref<2x4x30x1xf32, #tpu.memory_space<vmem>>, %arg4: memref<2x2x30x1xf32, #tpu.memory_space<vmem>>, %arg5: memref<2x2x30x1xf32, #tpu.memory_space<vmem>>, %arg6: memref<2x2x20x30xf32, #tpu.memory_space<vmem>>, %arg7: memref<2x2x20x1xf32, #tpu.memory_space<vmem>>, %arg8: memref<2x2x10x20xf32, #tpu.memory_space<vmem>>, %arg9: memref<2x2x10x1xf32, #tpu.memory_space<vmem>>, %arg10: memref<2x2x10x1xf32, #tpu.memory_space<vmem>>, %arg11: memref<2x2x1x1xf32, #tpu.memory_space<vmem>>, %arg12: memref<1x128xf32, #tpu.memory_space<vmem>>) attributes {dimension_semantics = [#tpu.dimension_semantics<parallel>], iteration_bounds = array<i64: 1>, scalar_prefetch = 0 : i64, scratch_operands = 0 : i64, tpu.core_type = #tpu.core_type<tc>, window_params = [{transform_indices = @transform_0, window_bounds = array<i64: 20, 128>}, {pipeline_mode = #tpu.pipeline_mode<synchronous>, transform_indices = @transform_1, window_bounds = array<i64: 2, 2, 30, 20>}, {pipeline_mode = #tpu.pipeline_mode<synchronous>, transform_indices = @transform_2, window_bounds = array<i64: 2, 4, 30, 1>}, {pipeline_mode = #tpu.pipeline_mode<synchronous>, transform_indices = @transform_3, window_bounds = array<i64: 2, 2, 30, 1>}, {pipeline_mode = #tpu.pipeline_mode<synchronous>, transform_indices = @transform_4, window_bounds = array<i64: 2, 2, 30, 1>}, {pipeline_mode = #tpu.pipeline_mode<synchronous>, transform_indices = @transform_5, window_bounds = array<i64: 2, 2, 20, 30>}, {pipeline_mode = #tpu.pipeline_mode<synchronous>, transform_indices = @transform_6, window_bounds = array<i64: 2, 2, 20, 1>}, {pipeline_mode = #tpu.pipeline_mode<synchronous>, transform_indices = @transform_7, window_bounds = array<i64: 2, 2, 10, 20>}, {pipeline_mode = #tpu.pipeline_mode<synchronous>, transform_indices = @transform_8, window_bounds = array<i64: 2, 2, 10, 1>}, {pipeline_mode = #tpu.pipeline_mode<synchronous>, transform_indices = @transform_9, window_bounds = array<i64: 2, 2, 10, 1>}, {pipeline_mode = #tpu.pipeline_mode<synchronous>, transform_indices = @transform_10, window_bounds = array<i64: 2, 2, 1, 1>}, {transform_indices = @transform_11, window_bounds = array<i64: 1, 128>}]} {
    %c0 = arith.constant 0 : index
    %c0_0 = arith.constant 0 : index
    %0 = vector.load %arg1[%c0, %c0_0] : memref<20x128xf32, #tpu.memory_space<vmem>>, vector<20x128xf32>
    %cst = arith.constant 0.000000e+00 : f32
    %1 = vector.broadcast %cst : f32 to vector<1x128xf32>
    %c0_1 = arith.constant 0 : index
    %c0_2 = arith.constant 0 : index
    %c0_3 = arith.constant 0 : index
    %c0_4 = arith.constant 0 : index
    %2 = vector.load %arg2[%c0_1, %c0_2, %c0_3, %c0_4] : memref<2x2x30x20xf32, #tpu.memory_space<vmem>>, vector<1x1x30x20xf32>
    %3 = vector.shape_cast %2 : vector<1x1x30x20xf32> to vector<30x20xf32>
    %cst_5 = arith.constant dense<0.000000e+00> : vector<30x128xf32>
    %4 = tpu.matmul %3, %0, %cst_5 {dimension_numbers = #tpu.dot_dimension_numbers<[1], [0], [0], [1], [0, 0, 1, 1], [], []>} : vector<30x20xf32>, vector<20x128xf32>, vector<30x128xf32> -> vector<30x128xf32>
    %c0_6 = arith.constant 0 : index
    %c0_7 = arith.constant 0 : index
    %c0_8 = arith.constant 0 : index
    %c0_9 = arith.constant 0 : index
    %5 = vector.load %arg4[%c0_6, %c0_7, %c0_8, %c0_9] : memref<2x2x30x1xf32, #tpu.memory_space<vmem>>, vector<1x1x30x1xf32>
    %6 = vector.shape_cast %5 : vector<1x1x30x1xf32> to vector<30x1xf32>
    %7 = vector.broadcast %6 : vector<30x1xf32> to vector<30x128xf32>
    %8 = arith.addf %4, %7 : vector<30x128xf32>
    %9 = math.tanh %8 : vector<30x128xf32>
    %c0_10 = arith.constant 0 : index
    %c0_11 = arith.constant 0 : index
    %c0_12 = arith.constant 0 : index
    %c0_13 = arith.constant 0 : index
    %10 = vector.load %arg5[%c0_10, %c0_11, %c0_12, %c0_13] : memref<2x2x30x1xf32, #tpu.memory_space<vmem>>, vector<1x1x30x1xf32>
    %11 = vector.shape_cast %10 : vector<1x1x30x1xf32> to vector<30x1xf32>
    %12 = vector.broadcast %11 : vector<30x1xf32> to vector<30x128xf32>
    %13 = arith.mulf %9, %12 : vector<30x128xf32>
    %cst_14 = arith.constant dense<0.000000e+00> : vector<128xf32>
    %14 = vector.multi_reduction <add>, %13, %cst_14 [0] : vector<30x128xf32> to vector<128xf32>
    %15 = vector.shape_cast %14 : vector<128xf32> to vector<1x128xf32>
    %c0_15 = arith.constant 0 : index
    %c0_16 = arith.constant 0 : index
    %c0_17 = arith.constant 0 : index
    %c0_18 = arith.constant 0 : index
    %16 = vector.load %arg6[%c0_15, %c0_16, %c0_17, %c0_18] : memref<2x2x20x30xf32, #tpu.memory_space<vmem>>, vector<1x1x20x30xf32>
    %17 = vector.shape_cast %16 : vector<1x1x20x30xf32> to vector<20x30xf32>
    %cst_19 = arith.constant dense<0.000000e+00> : vector<20x128xf32>
    %18 = tpu.matmul %17, %9, %cst_19 {dimension_numbers = #tpu.dot_dimension_numbers<[1], [0], [0], [1], [0, 0, 1, 1], [], []>} : vector<20x30xf32>, vector<30x128xf32>, vector<20x128xf32> -> vector<20x128xf32>
    %c0_20 = arith.constant 0 : index
    %c0_21 = arith.constant 0 : index
    %c0_22 = arith.constant 0 : index
    %c0_23 = arith.constant 0 : index
    %19 = vector.load %arg7[%c0_20, %c0_21, %c0_22, %c0_23] : memref<2x2x20x1xf32, #tpu.memory_space<vmem>>, vector<1x1x20x1xf32>
    %20 = vector.shape_cast %19 : vector<1x1x20x1xf32> to vector<20x1xf32>
    %21 = vector.broadcast %20 : vector<20x1xf32> to vector<20x128xf32>
    %22 = arith.addf %18, %21 : vector<20x128xf32>
    %23 = math.tanh %22 : vector<20x128xf32>
    %c0_24 = arith.constant 0 : index
    %c0_25 = arith.constant 0 : index
    %c0_26 = arith.constant 0 : index
    %c0_27 = arith.constant 0 : index
    %24 = vector.load %arg8[%c0_24, %c0_25, %c0_26, %c0_27] : memref<2x2x10x20xf32, #tpu.memory_space<vmem>>, vector<1x1x10x20xf32>
    %25 = vector.shape_cast %24 : vector<1x1x10x20xf32> to vector<10x20xf32>
    %cst_28 = arith.constant dense<0.000000e+00> : vector<10x128xf32>
    %26 = tpu.matmul %25, %23, %cst_28 {dimension_numbers = #tpu.dot_dimension_numbers<[1], [0], [0], [1], [0, 0, 1, 1], [], []>} : vector<10x20xf32>, vector<20x128xf32>, vector<10x128xf32> -> vector<10x128xf32>
    %c0_29 = arith.constant 0 : index
    %c0_30 = arith.constant 0 : index
    %c0_31 = arith.constant 0 : index
    %c0_32 = arith.constant 0 : index
    %27 = vector.load %arg9[%c0_29, %c0_30, %c0_31, %c0_32] : memref<2x2x10x1xf32, #tpu.memory_space<vmem>>, vector<1x1x10x1xf32>
    %28 = vector.shape_cast %27 : vector<1x1x10x1xf32> to vector<10x1xf32>
    %29 = vector.broadcast %28 : vector<10x1xf32> to vector<10x128xf32>
    %30 = arith.addf %26, %29 : vector<10x128xf32>
    %31 = math.tanh %30 : vector<10x128xf32>
    %c0_33 = arith.constant 0 : index
    %c0_34 = arith.constant 0 : index
    %c0_35 = arith.constant 0 : index
    %c0_36 = arith.constant 0 : index
    %32 = vector.load %arg10[%c0_33, %c0_34, %c0_35, %c0_36] : memref<2x2x10x1xf32, #tpu.memory_space<vmem>>, vector<1x1x10x1xf32>
    %33 = vector.shape_cast %32 : vector<1x1x10x1xf32> to vector<10x1xf32>
    %34 = vector.broadcast %33 : vector<10x1xf32> to vector<10x128xf32>
    %35 = arith.mulf %31, %34 : vector<10x128xf32>
    %cst_37 = arith.constant dense<0.000000e+00> : vector<128xf32>
    %36 = vector.multi_reduction <add>, %35, %cst_37 [0] : vector<10x128xf32> to vector<128xf32>
    %37 = vector.shape_cast %36 : vector<128xf32> to vector<1x128xf32>
    %38 = arith.addf %15, %37 : vector<1x128xf32>
    %c0_38 = arith.constant 0 : index
    %c0_39 = arith.constant 0 : index
    %c0_40 = arith.constant 0 : index
    %c0_41 = arith.constant 0 : index
    %39 = vector.load %arg11[%c0_38, %c0_39, %c0_40, %c0_41] : memref<2x2x1x1xf32, #tpu.memory_space<vmem>>, vector<1x1x1x1xf32>
    %40 = vector.shape_cast %39 : vector<1x1x1x1xf32> to vector<1x1xf32>
    %41 = vector.broadcast %40 : vector<1x1xf32> to vector<1x128xf32>
    %42 = arith.addf %38, %41 : vector<1x128xf32>
    %c0_42 = arith.constant 0 : index
    %c1 = arith.constant 1 : index
    %c0_43 = arith.constant 0 : index
    %c0_44 = arith.constant 0 : index
    %43 = vector.load %arg2[%c0_42, %c1, %c0_43, %c0_44] : memref<2x2x30x20xf32, #tpu.memory_space<vmem>>, vector<1x1x30x20xf32>
    %44 = vector.shape_cast %43 : vector<1x1x30x20xf32> to vector<30x20xf32>
    %cst_45 = arith.constant dense<0.000000e+00> : vector<30x128xf32>
    %45 = tpu.matmul %44, %0, %cst_45 {dimension_numbers = #tpu.dot_dimension_numbers<[1], [0], [0], [1], [0, 0, 1, 1], [], []>} : vector<30x20xf32>, vector<20x128xf32>, vector<30x128xf32> -> vector<30x128xf32>
    %c0_46 = arith.constant 0 : index
    %c1_47 = arith.constant 1 : index
    %c0_48 = arith.constant 0 : index
    %c0_49 = arith.constant 0 : index
    %46 = vector.load %arg4[%c0_46, %c1_47, %c0_48, %c0_49] : memref<2x2x30x1xf32, #tpu.memory_space<vmem>>, vector<1x1x30x1xf32>
    %47 = vector.shape_cast %46 : vector<1x1x30x1xf32> to vector<30x1xf32>
    %48 = vector.broadcast %47 : vector<30x1xf32> to vector<30x128xf32>
    %49 = arith.addf %45, %48 : vector<30x128xf32>
    %c0_50 = arith.constant 0 : index
    %c2 = arith.constant 2 : index
    %c0_51 = arith.constant 0 : index
    %c0_52 = arith.constant 0 : index
    %50 = vector.load %arg3[%c0_50, %c2, %c0_51, %c0_52] : memref<2x4x30x1xf32, #tpu.memory_space<vmem>>, vector<1x1x30x1xf32>
    %51 = vector.shape_cast %50 : vector<1x1x30x1xf32> to vector<30x1xf32>
    %52 = vector.broadcast %51 : vector<30x1xf32> to vector<30x128xf32>
    %53 = vector.broadcast %42 : vector<1x128xf32> to vector<30x128xf32>
    %54 = arith.mulf %52, %53 : vector<30x128xf32>
    %55 = arith.addf %49, %54 : vector<30x128xf32>
    %56 = math.tanh %55 : vector<30x128xf32>
    %c0_53 = arith.constant 0 : index
    %c1_54 = arith.constant 1 : index
    %c0_55 = arith.constant 0 : index
    %c0_56 = arith.constant 0 : index
    %57 = vector.load %arg5[%c0_53, %c1_54, %c0_55, %c0_56] : memref<2x2x30x1xf32, #tpu.memory_space<vmem>>, vector<1x1x30x1xf32>
    %58 = vector.shape_cast %57 : vector<1x1x30x1xf32> to vector<30x1xf32>
    %59 = vector.broadcast %58 : vector<30x1xf32> to vector<30x128xf32>
    %60 = arith.mulf %56, %59 : vector<30x128xf32>
    %cst_57 = arith.constant dense<0.000000e+00> : vector<128xf32>
    %61 = vector.multi_reduction <add>, %60, %cst_57 [0] : vector<30x128xf32> to vector<128xf32>
    %62 = vector.shape_cast %61 : vector<128xf32> to vector<1x128xf32>
    %c0_58 = arith.constant 0 : index
    %c1_59 = arith.constant 1 : index
    %c0_60 = arith.constant 0 : index
    %c0_61 = arith.constant 0 : index
    %63 = vector.load %arg6[%c0_58, %c1_59, %c0_60, %c0_61] : memref<2x2x20x30xf32, #tpu.memory_space<vmem>>, vector<1x1x20x30xf32>
    %64 = vector.shape_cast %63 : vector<1x1x20x30xf32> to vector<20x30xf32>
    %cst_62 = arith.constant dense<0.000000e+00> : vector<20x128xf32>
    %65 = tpu.matmul %64, %56, %cst_62 {dimension_numbers = #tpu.dot_dimension_numbers<[1], [0], [0], [1], [0, 0, 1, 1], [], []>} : vector<20x30xf32>, vector<30x128xf32>, vector<20x128xf32> -> vector<20x128xf32>
    %c0_63 = arith.constant 0 : index
    %c1_64 = arith.constant 1 : index
    %c0_65 = arith.constant 0 : index
    %c0_66 = arith.constant 0 : index
    %66 = vector.load %arg7[%c0_63, %c1_64, %c0_65, %c0_66] : memref<2x2x20x1xf32, #tpu.memory_space<vmem>>, vector<1x1x20x1xf32>
    %67 = vector.shape_cast %66 : vector<1x1x20x1xf32> to vector<20x1xf32>
    %68 = vector.broadcast %67 : vector<20x1xf32> to vector<20x128xf32>
    %69 = arith.addf %65, %68 : vector<20x128xf32>
    %70 = math.tanh %69 : vector<20x128xf32>
    %c0_67 = arith.constant 0 : index
    %c1_68 = arith.constant 1 : index
    %c0_69 = arith.constant 0 : index
    %c0_70 = arith.constant 0 : index
    %71 = vector.load %arg8[%c0_67, %c1_68, %c0_69, %c0_70] : memref<2x2x10x20xf32, #tpu.memory_space<vmem>>, vector<1x1x10x20xf32>
    %72 = vector.shape_cast %71 : vector<1x1x10x20xf32> to vector<10x20xf32>
    %cst_71 = arith.constant dense<0.000000e+00> : vector<10x128xf32>
    %73 = tpu.matmul %72, %70, %cst_71 {dimension_numbers = #tpu.dot_dimension_numbers<[1], [0], [0], [1], [0, 0, 1, 1], [], []>} : vector<10x20xf32>, vector<20x128xf32>, vector<10x128xf32> -> vector<10x128xf32>
    %c0_72 = arith.constant 0 : index
    %c1_73 = arith.constant 1 : index
    %c0_74 = arith.constant 0 : index
    %c0_75 = arith.constant 0 : index
    %74 = vector.load %arg9[%c0_72, %c1_73, %c0_74, %c0_75] : memref<2x2x10x1xf32, #tpu.memory_space<vmem>>, vector<1x1x10x1xf32>
    %75 = vector.shape_cast %74 : vector<1x1x10x1xf32> to vector<10x1xf32>
    %76 = vector.broadcast %75 : vector<10x1xf32> to vector<10x128xf32>
    %77 = arith.addf %73, %76 : vector<10x128xf32>
    %78 = math.tanh %77 : vector<10x128xf32>
    %c0_76 = arith.constant 0 : index
    %c1_77 = arith.constant 1 : index
    %c0_78 = arith.constant 0 : index
    %c0_79 = arith.constant 0 : index
    %79 = vector.load %arg10[%c0_76, %c1_77, %c0_78, %c0_79] : memref<2x2x10x1xf32, #tpu.memory_space<vmem>>, vector<1x1x10x1xf32>
    %80 = vector.shape_cast %79 : vector<1x1x10x1xf32> to vector<10x1xf32>
    %81 = vector.broadcast %80 : vector<10x1xf32> to vector<10x128xf32>
    %82 = arith.mulf %78, %81 : vector<10x128xf32>
    %cst_80 = arith.constant dense<0.000000e+00> : vector<128xf32>
    %83 = vector.multi_reduction <add>, %82, %cst_80 [0] : vector<10x128xf32> to vector<128xf32>
    %84 = vector.shape_cast %83 : vector<128xf32> to vector<1x128xf32>
    %85 = arith.addf %62, %84 : vector<1x128xf32>
    %c0_81 = arith.constant 0 : index
    %c1_82 = arith.constant 1 : index
    %c0_83 = arith.constant 0 : index
    %c0_84 = arith.constant 0 : index
    %86 = vector.load %arg11[%c0_81, %c1_82, %c0_83, %c0_84] : memref<2x2x1x1xf32, #tpu.memory_space<vmem>>, vector<1x1x1x1xf32>
    %87 = vector.shape_cast %86 : vector<1x1x1x1xf32> to vector<1x1xf32>
    %88 = vector.broadcast %87 : vector<1x1xf32> to vector<1x128xf32>
    %89 = arith.addf %85, %88 : vector<1x128xf32>
    %90 = arith.addf %1, %89 : vector<1x128xf32>
    %c1_85 = arith.constant 1 : index
    %c0_86 = arith.constant 0 : index
    %c0_87 = arith.constant 0 : index
    %c0_88 = arith.constant 0 : index
    %91 = vector.load %arg2[%c1_85, %c0_86, %c0_87, %c0_88] : memref<2x2x30x20xf32, #tpu.memory_space<vmem>>, vector<1x1x30x20xf32>
    %92 = vector.shape_cast %91 : vector<1x1x30x20xf32> to vector<30x20xf32>
    %cst_89 = arith.constant dense<0.000000e+00> : vector<30x128xf32>
    %93 = tpu.matmul %92, %0, %cst_89 {dimension_numbers = #tpu.dot_dimension_numbers<[1], [0], [0], [1], [0, 0, 1, 1], [], []>} : vector<30x20xf32>, vector<20x128xf32>, vector<30x128xf32> -> vector<30x128xf32>
    %c1_90 = arith.constant 1 : index
    %c0_91 = arith.constant 0 : index
    %c0_92 = arith.constant 0 : index
    %c0_93 = arith.constant 0 : index
    %94 = vector.load %arg4[%c1_90, %c0_91, %c0_92, %c0_93] : memref<2x2x30x1xf32, #tpu.memory_space<vmem>>, vector<1x1x30x1xf32>
    %95 = vector.shape_cast %94 : vector<1x1x30x1xf32> to vector<30x1xf32>
    %96 = vector.broadcast %95 : vector<30x1xf32> to vector<30x128xf32>
    %97 = arith.addf %93, %96 : vector<30x128xf32>
    %98 = math.tanh %97 : vector<30x128xf32>
    %c1_94 = arith.constant 1 : index
    %c0_95 = arith.constant 0 : index
    %c0_96 = arith.constant 0 : index
    %c0_97 = arith.constant 0 : index
    %99 = vector.load %arg5[%c1_94, %c0_95, %c0_96, %c0_97] : memref<2x2x30x1xf32, #tpu.memory_space<vmem>>, vector<1x1x30x1xf32>
    %100 = vector.shape_cast %99 : vector<1x1x30x1xf32> to vector<30x1xf32>
    %101 = vector.broadcast %100 : vector<30x1xf32> to vector<30x128xf32>
    %102 = arith.mulf %98, %101 : vector<30x128xf32>
    %cst_98 = arith.constant dense<0.000000e+00> : vector<128xf32>
    %103 = vector.multi_reduction <add>, %102, %cst_98 [0] : vector<30x128xf32> to vector<128xf32>
    %104 = vector.shape_cast %103 : vector<128xf32> to vector<1x128xf32>
    %c1_99 = arith.constant 1 : index
    %c0_100 = arith.constant 0 : index
    %c0_101 = arith.constant 0 : index
    %c0_102 = arith.constant 0 : index
    %105 = vector.load %arg6[%c1_99, %c0_100, %c0_101, %c0_102] : memref<2x2x20x30xf32, #tpu.memory_space<vmem>>, vector<1x1x20x30xf32>
    %106 = vector.shape_cast %105 : vector<1x1x20x30xf32> to vector<20x30xf32>
    %cst_103 = arith.constant dense<0.000000e+00> : vector<20x128xf32>
    %107 = tpu.matmul %106, %98, %cst_103 {dimension_numbers = #tpu.dot_dimension_numbers<[1], [0], [0], [1], [0, 0, 1, 1], [], []>} : vector<20x30xf32>, vector<30x128xf32>, vector<20x128xf32> -> vector<20x128xf32>
    %c1_104 = arith.constant 1 : index
    %c0_105 = arith.constant 0 : index
    %c0_106 = arith.constant 0 : index
    %c0_107 = arith.constant 0 : index
    %108 = vector.load %arg7[%c1_104, %c0_105, %c0_106, %c0_107] : memref<2x2x20x1xf32, #tpu.memory_space<vmem>>, vector<1x1x20x1xf32>
    %109 = vector.shape_cast %108 : vector<1x1x20x1xf32> to vector<20x1xf32>
    %110 = vector.broadcast %109 : vector<20x1xf32> to vector<20x128xf32>
    %111 = arith.addf %107, %110 : vector<20x128xf32>
    %112 = math.tanh %111 : vector<20x128xf32>
    %c1_108 = arith.constant 1 : index
    %c0_109 = arith.constant 0 : index
    %c0_110 = arith.constant 0 : index
    %c0_111 = arith.constant 0 : index
    %113 = vector.load %arg8[%c1_108, %c0_109, %c0_110, %c0_111] : memref<2x2x10x20xf32, #tpu.memory_space<vmem>>, vector<1x1x10x20xf32>
    %114 = vector.shape_cast %113 : vector<1x1x10x20xf32> to vector<10x20xf32>
    %cst_112 = arith.constant dense<0.000000e+00> : vector<10x128xf32>
    %115 = tpu.matmul %114, %112, %cst_112 {dimension_numbers = #tpu.dot_dimension_numbers<[1], [0], [0], [1], [0, 0, 1, 1], [], []>} : vector<10x20xf32>, vector<20x128xf32>, vector<10x128xf32> -> vector<10x128xf32>
    %c1_113 = arith.constant 1 : index
    %c0_114 = arith.constant 0 : index
    %c0_115 = arith.constant 0 : index
    %c0_116 = arith.constant 0 : index
    %116 = vector.load %arg9[%c1_113, %c0_114, %c0_115, %c0_116] : memref<2x2x10x1xf32, #tpu.memory_space<vmem>>, vector<1x1x10x1xf32>
    %117 = vector.shape_cast %116 : vector<1x1x10x1xf32> to vector<10x1xf32>
    %118 = vector.broadcast %117 : vector<10x1xf32> to vector<10x128xf32>
    %119 = arith.addf %115, %118 : vector<10x128xf32>
    %120 = math.tanh %119 : vector<10x128xf32>
    %c1_117 = arith.constant 1 : index
    %c0_118 = arith.constant 0 : index
    %c0_119 = arith.constant 0 : index
    %c0_120 = arith.constant 0 : index
    %121 = vector.load %arg10[%c1_117, %c0_118, %c0_119, %c0_120] : memref<2x2x10x1xf32, #tpu.memory_space<vmem>>, vector<1x1x10x1xf32>
    %122 = vector.shape_cast %121 : vector<1x1x10x1xf32> to vector<10x1xf32>
    %123 = vector.broadcast %122 : vector<10x1xf32> to vector<10x128xf32>
    %124 = arith.mulf %120, %123 : vector<10x128xf32>
    %cst_121 = arith.constant dense<0.000000e+00> : vector<128xf32>
    %125 = vector.multi_reduction <add>, %124, %cst_121 [0] : vector<10x128xf32> to vector<128xf32>
    %126 = vector.shape_cast %125 : vector<128xf32> to vector<1x128xf32>
    %127 = arith.addf %104, %126 : vector<1x128xf32>
    %c1_122 = arith.constant 1 : index
    %c0_123 = arith.constant 0 : index
    %c0_124 = arith.constant 0 : index
    %c0_125 = arith.constant 0 : index
    %128 = vector.load %arg11[%c1_122, %c0_123, %c0_124, %c0_125] : memref<2x2x1x1xf32, #tpu.memory_space<vmem>>, vector<1x1x1x1xf32>
    %129 = vector.shape_cast %128 : vector<1x1x1x1xf32> to vector<1x1xf32>
    %130 = vector.broadcast %129 : vector<1x1xf32> to vector<1x128xf32>
    %131 = arith.addf %127, %130 : vector<1x128xf32>
    %c1_126 = arith.constant 1 : index
    %c1_127 = arith.constant 1 : index
    %c0_128 = arith.constant 0 : index
    %c0_129 = arith.constant 0 : index
    %132 = vector.load %arg2[%c1_126, %c1_127, %c0_128, %c0_129] : memref<2x2x30x20xf32, #tpu.memory_space<vmem>>, vector<1x1x30x20xf32>
    %133 = vector.shape_cast %132 : vector<1x1x30x20xf32> to vector<30x20xf32>
    %cst_130 = arith.constant dense<0.000000e+00> : vector<30x128xf32>
    %134 = tpu.matmul %133, %0, %cst_130 {dimension_numbers = #tpu.dot_dimension_numbers<[1], [0], [0], [1], [0, 0, 1, 1], [], []>} : vector<30x20xf32>, vector<20x128xf32>, vector<30x128xf32> -> vector<30x128xf32>
    %c1_131 = arith.constant 1 : index
    %c1_132 = arith.constant 1 : index
    %c0_133 = arith.constant 0 : index
    %c0_134 = arith.constant 0 : index
    %135 = vector.load %arg4[%c1_131, %c1_132, %c0_133, %c0_134] : memref<2x2x30x1xf32, #tpu.memory_space<vmem>>, vector<1x1x30x1xf32>
    %136 = vector.shape_cast %135 : vector<1x1x30x1xf32> to vector<30x1xf32>
    %137 = vector.broadcast %136 : vector<30x1xf32> to vector<30x128xf32>
    %138 = arith.addf %134, %137 : vector<30x128xf32>
    %c1_135 = arith.constant 1 : index
    %c2_136 = arith.constant 2 : index
    %c0_137 = arith.constant 0 : index
    %c0_138 = arith.constant 0 : index
    %139 = vector.load %arg3[%c1_135, %c2_136, %c0_137, %c0_138] : memref<2x4x30x1xf32, #tpu.memory_space<vmem>>, vector<1x1x30x1xf32>
    %140 = vector.shape_cast %139 : vector<1x1x30x1xf32> to vector<30x1xf32>
    %141 = vector.broadcast %140 : vector<30x1xf32> to vector<30x128xf32>
    %142 = vector.broadcast %131 : vector<1x128xf32> to vector<30x128xf32>
    %143 = arith.mulf %141, %142 : vector<30x128xf32>
    %144 = arith.addf %138, %143 : vector<30x128xf32>
    %145 = math.tanh %144 : vector<30x128xf32>
    %c1_139 = arith.constant 1 : index
    %c1_140 = arith.constant 1 : index
    %c0_141 = arith.constant 0 : index
    %c0_142 = arith.constant 0 : index
    %146 = vector.load %arg5[%c1_139, %c1_140, %c0_141, %c0_142] : memref<2x2x30x1xf32, #tpu.memory_space<vmem>>, vector<1x1x30x1xf32>
    %147 = vector.shape_cast %146 : vector<1x1x30x1xf32> to vector<30x1xf32>
    %148 = vector.broadcast %147 : vector<30x1xf32> to vector<30x128xf32>
    %149 = arith.mulf %145, %148 : vector<30x128xf32>
    %cst_143 = arith.constant dense<0.000000e+00> : vector<128xf32>
    %150 = vector.multi_reduction <add>, %149, %cst_143 [0] : vector<30x128xf32> to vector<128xf32>
    %151 = vector.shape_cast %150 : vector<128xf32> to vector<1x128xf32>
    %c1_144 = arith.constant 1 : index
    %c1_145 = arith.constant 1 : index
    %c0_146 = arith.constant 0 : index
    %c0_147 = arith.constant 0 : index
    %152 = vector.load %arg6[%c1_144, %c1_145, %c0_146, %c0_147] : memref<2x2x20x30xf32, #tpu.memory_space<vmem>>, vector<1x1x20x30xf32>
    %153 = vector.shape_cast %152 : vector<1x1x20x30xf32> to vector<20x30xf32>
    %cst_148 = arith.constant dense<0.000000e+00> : vector<20x128xf32>
    %154 = tpu.matmul %153, %145, %cst_148 {dimension_numbers = #tpu.dot_dimension_numbers<[1], [0], [0], [1], [0, 0, 1, 1], [], []>} : vector<20x30xf32>, vector<30x128xf32>, vector<20x128xf32> -> vector<20x128xf32>
    %c1_149 = arith.constant 1 : index
    %c1_150 = arith.constant 1 : index
    %c0_151 = arith.constant 0 : index
    %c0_152 = arith.constant 0 : index
    %155 = vector.load %arg7[%c1_149, %c1_150, %c0_151, %c0_152] : memref<2x2x20x1xf32, #tpu.memory_space<vmem>>, vector<1x1x20x1xf32>
    %156 = vector.shape_cast %155 : vector<1x1x20x1xf32> to vector<20x1xf32>
    %157 = vector.broadcast %156 : vector<20x1xf32> to vector<20x128xf32>
    %158 = arith.addf %154, %157 : vector<20x128xf32>
    %159 = math.tanh %158 : vector<20x128xf32>
    %c1_153 = arith.constant 1 : index
    %c1_154 = arith.constant 1 : index
    %c0_155 = arith.constant 0 : index
    %c0_156 = arith.constant 0 : index
    %160 = vector.load %arg8[%c1_153, %c1_154, %c0_155, %c0_156] : memref<2x2x10x20xf32, #tpu.memory_space<vmem>>, vector<1x1x10x20xf32>
    %161 = vector.shape_cast %160 : vector<1x1x10x20xf32> to vector<10x20xf32>
    %cst_157 = arith.constant dense<0.000000e+00> : vector<10x128xf32>
    %162 = tpu.matmul %161, %159, %cst_157 {dimension_numbers = #tpu.dot_dimension_numbers<[1], [0], [0], [1], [0, 0, 1, 1], [], []>} : vector<10x20xf32>, vector<20x128xf32>, vector<10x128xf32> -> vector<10x128xf32>
    %c1_158 = arith.constant 1 : index
    %c1_159 = arith.constant 1 : index
    %c0_160 = arith.constant 0 : index
    %c0_161 = arith.constant 0 : index
    %163 = vector.load %arg9[%c1_158, %c1_159, %c0_160, %c0_161] : memref<2x2x10x1xf32, #tpu.memory_space<vmem>>, vector<1x1x10x1xf32>
    %164 = vector.shape_cast %163 : vector<1x1x10x1xf32> to vector<10x1xf32>
    %165 = vector.broadcast %164 : vector<10x1xf32> to vector<10x128xf32>
    %166 = arith.addf %162, %165 : vector<10x128xf32>
    %167 = math.tanh %166 : vector<10x128xf32>
    %c1_162 = arith.constant 1 : index
    %c1_163 = arith.constant 1 : index
    %c0_164 = arith.constant 0 : index
    %c0_165 = arith.constant 0 : index
    %168 = vector.load %arg10[%c1_162, %c1_163, %c0_164, %c0_165] : memref<2x2x10x1xf32, #tpu.memory_space<vmem>>, vector<1x1x10x1xf32>
    %169 = vector.shape_cast %168 : vector<1x1x10x1xf32> to vector<10x1xf32>
    %170 = vector.broadcast %169 : vector<10x1xf32> to vector<10x128xf32>
    %171 = arith.mulf %167, %170 : vector<10x128xf32>
    %cst_166 = arith.constant dense<0.000000e+00> : vector<128xf32>
    %172 = vector.multi_reduction <add>, %171, %cst_166 [0] : vector<10x128xf32> to vector<128xf32>
    %173 = vector.shape_cast %172 : vector<128xf32> to vector<1x128xf32>
    %174 = arith.addf %151, %173 : vector<1x128xf32>
    %c1_167 = arith.constant 1 : index
    %c1_168 = arith.constant 1 : index
    %c0_169 = arith.constant 0 : index
    %c0_170 = arith.constant 0 : index
    %175 = vector.load %arg11[%c1_167, %c1_168, %c0_169, %c0_170] : memref<2x2x1x1xf32, #tpu.memory_space<vmem>>, vector<1x1x1x1xf32>
    %176 = vector.shape_cast %175 : vector<1x1x1x1xf32> to vector<1x1xf32>
    %177 = vector.broadcast %176 : vector<1x1xf32> to vector<1x128xf32>
    %178 = arith.addf %174, %177 : vector<1x128xf32>
    %179 = arith.addf %90, %178 : vector<1x128xf32>
    %cst_171 = arith.constant 5.000000e-01 : f32
    %180 = vector.broadcast %cst_171 : f32 to vector<1x128xf32>
    %181 = arith.mulf %179, %180 : vector<1x128xf32>
    %c0_172 = arith.constant 0 : index
    %c0_173 = arith.constant 0 : index
    %182 = vector.load %arg12[%c0_172, %c0_173] : memref<1x128xf32, #tpu.memory_space<vmem>>, vector<1x128xf32>
    tpu.vector_store %arg12[%c0_172, %c0_173], %181 {strides = array<i32>} : memref<1x128xf32, #tpu.memory_space<vmem>>, vector<1x128xf32>,
    return
  }
  func.func @transform_0(%arg0: i32) -> (i32, i32) {
    %c0_i32 = arith.constant 0 : i32
    %c0_i32_0 = arith.constant 0 : i32
    return %c0_i32, %arg0 : i32, i32
  }
  func.func @transform_1(%arg0: i32) -> (i32, i32, i32, i32) {
    %c0_i32 = arith.constant 0 : i32
    %c0_i32_0 = arith.constant 0 : i32
    %c0_i32_1 = arith.constant 0 : i32
    %c0_i32_2 = arith.constant 0 : i32
    %c0_i32_3 = arith.constant 0 : i32
    return %c0_i32, %c0_i32_0, %c0_i32_1, %c0_i32_2 : i32, i32, i32, i32
  }
  func.func @transform_2(%arg0: i32) -> (i32, i32, i32, i32) {
    %c0_i32 = arith.constant 0 : i32
    %c0_i32_0 = arith.constant 0 : i32
    %c0_i32_1 = arith.constant 0 : i32
    %c0_i32_2 = arith.constant 0 : i32
    %c0_i32_3 = arith.constant 0 : i32
    return %c0_i32, %c0_i32_0, %c0_i32_1, %c0_i32_2 : i32, i32, i32, i32
  }
  func.func @transform_3(%arg0: i32) -> (i32, i32, i32, i32) {
    %c0_i32 = arith.constant 0 : i32
    %c0_i32_0 = arith.constant 0 : i32
    %c0_i32_1 = arith.constant 0 : i32
    %c0_i32_2 = arith.constant 0 : i32
    %c0_i32_3 = arith.constant 0 : i32
    return %c0_i32, %c0_i32_0, %c0_i32_1, %c0_i32_2 : i32, i32, i32, i32
  }
  func.func @transform_4(%arg0: i32) -> (i32, i32, i32, i32) {
    %c0_i32 = arith.constant 0 : i32
    %c0_i32_0 = arith.constant 0 : i32
    %c0_i32_1 = arith.constant 0 : i32
    %c0_i32_2 = arith.constant 0 : i32
    %c0_i32_3 = arith.constant 0 : i32
    return %c0_i32, %c0_i32_0, %c0_i32_1, %c0_i32_2 : i32, i32, i32, i32
  }
  func.func @transform_5(%arg0: i32) -> (i32, i32, i32, i32) {
    %c0_i32 = arith.constant 0 : i32
    %c0_i32_0 = arith.constant 0 : i32
    %c0_i32_1 = arith.constant 0 : i32
    %c0_i32_2 = arith.constant 0 : i32
    %c0_i32_3 = arith.constant 0 : i32
    return %c0_i32, %c0_i32_0, %c0_i32_1, %c0_i32_2 : i32, i32, i32, i32
  }
  func.func @transform_6(%arg0: i32) -> (i32, i32, i32, i32) {
    %c0_i32 = arith.constant 0 : i32
    %c0_i32_0 = arith.constant 0 : i32
    %c0_i32_1 = arith.constant 0 : i32
    %c0_i32_2 = arith.constant 0 : i32
    %c0_i32_3 = arith.constant 0 : i32
    return %c0_i32, %c0_i32_0, %c0_i32_1, %c0_i32_2 : i32, i32, i32, i32
  }
  func.func @transform_7(%arg0: i32) -> (i32, i32, i32, i32) {
    %c0_i32 = arith.constant 0 : i32
    %c0_i32_0 = arith.constant 0 : i32
    %c0_i32_1 = arith.constant 0 : i32
    %c0_i32_2 = arith.constant 0 : i32
    %c0_i32_3 = arith.constant 0 : i32
    return %c0_i32, %c0_i32_0, %c0_i32_1, %c0_i32_2 : i32, i32, i32, i32
  }
  func.func @transform_8(%arg0: i32) -> (i32, i32, i32, i32) {
    %c0_i32 = arith.constant 0 : i32
    %c0_i32_0 = arith.constant 0 : i32
    %c0_i32_1 = arith.constant 0 : i32
    %c0_i32_2 = arith.constant 0 : i32
    %c0_i32_3 = arith.constant 0 : i32
    return %c0_i32, %c0_i32_0, %c0_i32_1, %c0_i32_2 : i32, i32, i32, i32
  }
  func.func @transform_9(%arg0: i32) -> (i32, i32, i32, i32) {
    %c0_i32 = arith.constant 0 : i32
    %c0_i32_0 = arith.constant 0 : i32
    %c0_i32_1 = arith.constant 0 : i32
    %c0_i32_2 = arith.constant 0 : i32
    %c0_i32_3 = arith.constant 0 : i32
    return %c0_i32, %c0_i32_0, %c0_i32_1, %c0_i32_2 : i32, i32, i32, i32
  }
  func.func @transform_10(%arg0: i32) -> (i32, i32, i32, i32) {
    %c0_i32 = arith.constant 0 : i32
    %c0_i32_0 = arith.constant 0 : i32
    %c0_i32_1 = arith.constant 0 : i32
    %c0_i32_2 = arith.constant 0 : i32
    %c0_i32_3 = arith.constant 0 : i32
    return %c0_i32, %c0_i32_0, %c0_i32_1, %c0_i32_2 : i32, i32, i32, i32
  }
  func.func @transform_11(%arg0: i32) -> (i32, i32) {
    %c0_i32 = arith.constant 0 : i32
    %c0_i32_0 = arith.constant 0 : i32
    return %c0_i32, %arg0 : i32, i32
  }
}

</mosaic_0001>

<llo_original>
// kernel: tpu_custom_call.1
$region0: #{tpu_custom_call.1}
  #allocation0 [shape = 'u32[]', space=smem, size = 0x4, offset = 0x4, fixed_abs, tag = 'smem constant byte address 0x4 - core index']
  #allocation1 [shape = 'u32[144,128]{1,0:T(1,128)}', space=vmem, size = 0x12000, scoped, tag = 'internal scratch']
  %s0 = inlined_call_operand.vmem [shape: f32[20,128], index: 0, kind: input, shape index: {}]
  %s1 = inlined_call_operand.vmem [shape: f32[2,2,30,20], index: 1, kind: input, shape index: {}]
  %s2 = inlined_call_operand.vmem [shape: f32[2,4,30,1], index: 2, kind: input, shape index: {}]
  %s3 = inlined_call_operand.vmem [shape: f32[2,2,30,1], index: 3, kind: input, shape index: {}]
  %s4 = inlined_call_operand.vmem [shape: f32[2,2,30,1], index: 4, kind: input, shape index: {}]
  %s5 = inlined_call_operand.vmem [shape: f32[2,2,20,30], index: 5, kind: input, shape index: {}]
  %s6 = inlined_call_operand.vmem [shape: f32[2,2,20,1], index: 6, kind: input, shape index: {}]
  %s7 = inlined_call_operand.vmem [shape: f32[2,2,10,20], index: 7, kind: input, shape index: {}]
  %s8 = inlined_call_operand.vmem [shape: f32[2,2,10,1], index: 8, kind: input, shape index: {}]
  %s9 = inlined_call_operand.vmem [shape: f32[2,2,10,1], index: 9, kind: input, shape index: {}]
  %s10 = inlined_call_operand.vmem [shape: f32[2,2,1,1], index: 10, kind: input, shape index: {}]
  %s11 = inlined_call_operand.hbm [shape: f32[1,128], index: 11, kind: output, shape index: {}]
  %s12 = sld [smem:[#allocation0]]
  $region54: #{tpu_custom_call.1} parent=0
    _
  %s14 = ssub.s32 1, %s12
  %s15 = scalar_select 0, %s14, %s12
  $region1: #{tpu_custom_call.1} parent=0
    #allocation2 [shape = 'u8[512]{0}', space=vmem, size = 0x400, scoped, tag = 'output window, operand 0, single buffered']
    #allocation3 [shape = 's32[1]{0}', space=sflag, size = 0x4, scoped, tag = 'scoped memory for tpu_custom_call.1']
    %16 = vsyncpa [#allocation3], 0
    // Predicated region
    $region2: #{tpu_custom_call.1} parent=1 // pred_check
      _
    $region3: #{tpu_custom_call.1} parent=1 // pred_check_branch
      %18 = sbr.rel (0) target = $region5
    $region4: #{tpu_custom_call.1} parent=1 // pred_region
      _
    $region5: #{tpu_custom_call.1} parent=1 // pred_fallthru
      _
    // Predicated region
    $region6: #{tpu_custom_call.1} parent=1 // pred_check
      _
    $region7: #{tpu_custom_call.1} parent=1 // pred_check_branch
      %20 = sbr.rel (0) target = $region9
    $region8: #{tpu_custom_call.1} parent=1 // pred_region
      _
    $region9: #{tpu_custom_call.1} parent=1 // pred_fallthru
      _
    // Predicated region
    $region10: #{tpu_custom_call.1} parent=1 // pred_check
      _
    $region11: #{tpu_custom_call.1} parent=1 // pred_check_branch
      %22 = sbr.rel (0) target = $region13
    $region12: #{tpu_custom_call.1} parent=1 // pred_region
      _
    $region13: #{tpu_custom_call.1} parent=1 // pred_fallthru
      _
    // Predicated region
    $region14: #{tpu_custom_call.1} parent=1 // pred_check
      _
    $region15: #{tpu_custom_call.1} parent=1 // pred_check_branch
      %24 = sbr.rel (0) target = $region17
    $region16: #{tpu_custom_call.1} parent=1 // pred_region
      _
    $region17: #{tpu_custom_call.1} parent=1 // pred_fallthru
      _
    // Predicated region
    $region18: #{tpu_custom_call.1} parent=1 // pred_check
      _
    $region19: #{tpu_custom_call.1} parent=1 // pred_check_branch
      %26 = sbr.rel (0) target = $region21
    $region20: #{tpu_custom_call.1} parent=1 // pred_region
      _
    $region21: #{tpu_custom_call.1} parent=1 // pred_fallthru
      _
    // Predicated region
    $region22: #{tpu_custom_call.1} parent=1 // pred_check
      _
    $region23: #{tpu_custom_call.1} parent=1 // pred_check_branch
      %28 = sbr.rel (0) target = $region25
    $region24: #{tpu_custom_call.1} parent=1 // pred_region
      _
    $region25: #{tpu_custom_call.1} parent=1 // pred_fallthru
      _
    // Predicated region
    $region26: #{tpu_custom_call.1} parent=1 // pred_check
      _
    $region27: #{tpu_custom_call.1} parent=1 // pred_check_branch
      %30 = sbr.rel (0) target = $region29
    $region28: #{tpu_custom_call.1} parent=1 // pred_region
      _
    $region29: #{tpu_custom_call.1} parent=1 // pred_fallthru
      _
    // Predicated region
    $region30: #{tpu_custom_call.1} parent=1 // pred_check
      _
    $region31: #{tpu_custom_call.1} parent=1 // pred_check_branch
      %32 = sbr.rel (0) target = $region33
    $region32: #{tpu_custom_call.1} parent=1 // pred_region
      _
    $region33: #{tpu_custom_call.1} parent=1 // pred_fallthru
      _
    // Predicated region
    $region34: #{tpu_custom_call.1} parent=1 // pred_check
      _
    $region35: #{tpu_custom_call.1} parent=1 // pred_check_branch
      %34 = sbr.rel (0) target = $region37
    $region36: #{tpu_custom_call.1} parent=1 // pred_region
      _
    $region37: #{tpu_custom_call.1} parent=1 // pred_fallthru
      _
    // Predicated region
    $region38: #{tpu_custom_call.1} parent=1 // pred_check
      _
    $region39: #{tpu_custom_call.1} parent=1 // pred_check_branch
      %36 = sbr.rel (0) target = $region41
    $region40: #{tpu_custom_call.1} parent=1 // pred_region
      _
    $region41: #{tpu_custom_call.1} parent=1 // pred_fallthru
      _
    // Predicated region
    $region42: #{tpu_custom_call.1} parent=1 // pred_check
      _
    $region43: #{tpu_custom_call.1} parent=1 // pred_check_branch
      %38 = sbr.rel (0) target = $region45
    $region44: #{tpu_custom_call.1} parent=1 // pred_region
      _
    $region45: #{tpu_custom_call.1} parent=1 // pred_fallthru
      _
    %v39 = vld [vmem:[%s0] sm:$0xff]
    %v40 = vld [vmem:[%s0 + $0x8] sm:$0xff]
    %v41 = vld [vmem:[%s0 + $0x10] sm:$0xf]
    %v42 = vld [vmem:[%s1] sm:$0xff]
    %v43 = vld [vmem:[%s1 + $0x8] sm:$0xff]
    %v44 = vld [vmem:[%s1 + $0x10] sm:$0xff]
    %v45 = vld [vmem:[%s1 + $0x18] sm:$0x3f]
    %v46 = vld [vmem:[%s3] sm:$0xff]
    %v47 = vld [vmem:[%s3 + $0x8] sm:$0xff]
    %v48 = vld [vmem:[%s3 + $0x10] sm:$0xff]
    %v49 = vld [vmem:[%s3 + $0x18] sm:$0x3f]
    %51 = vset.pattern.permute.xlu0 0
    %52 = vperm.xlu0 %51, %v46
    %v53 = vpop.permute.xlu0 %52
    %56 = vset.pattern.permute.xlu0 0
    %57 = vperm.xlu0 %56, %v47
    %v58 = vpop.permute.xlu0 %57
    %61 = vset.pattern.permute.xlu0 0
    %62 = vperm.xlu0 %61, %v48
    %v63 = vpop.permute.xlu0 %62
    %66 = vset.pattern.permute.xlu0 0
    %67 = vperm.xlu0 %66, %v49
    %v68 = vpop.permute.xlu0 %67
    %vm70 = vcmask 162816
    %v72 = vsel %vm70, %v42, 0
    %v75 = vsel %vm70, %v43, 0
    %v78 = vsel %vm70, %v44, 0
    %v81 = vsel %vm70, %v45, 0
    %vm83 = vcmask 1043456
    %v85 = vsel %vm83, %v41, 0
    %87 = vmatprep.subr.mxu0 0.0
    %88 = vmatpush1.msra.mxu0 %v39
    %89 = vmatprep.subr.mxu0 0.0
    %90 = vmatpush1.msra.mxu0 %v40
    %91 = vmatprep.subr.mxu0 0.0
    %92 = vmatpush1.msra.mxu0 %v85
    %93 = vmatprep.subr.mxu0 0.0
    %94 = vmatpush1.msra.mxu0 0.0
    %95 = vmatprep.subr.mxu0 0.0
    %96 = vmatpush1.msra.mxu0 0.0
    %97 = vmatprep.subr.mxu0 0.0
    %98 = vmatpush1.msra.mxu0 0.0
    %99 = vmatprep.subr.mxu0 0.0
    %100 = vmatpush1.msra.mxu0 0.0
    %101 = vmatprep.subr.mxu0 0.0
    %102 = vmatpush1.msra.mxu0 0.0
    %103 = vmatprep.subr.mxu0 0.0
    %104 = vmatpush1.msra.mxu0 0.0
    %105 = vmatprep.subr.mxu0 0.0
    %106 = vmatpush1.msra.mxu0 0.0
    %107 = vmatprep.subr.mxu0 0.0
    %108 = vmatpush1.msra.mxu0 0.0
    %109 = vmatprep.subr.mxu0 0.0
    %110 = vmatpush1.msra.mxu0 0.0
    %111 = vmatprep.subr.mxu0 0.0
    %112 = vmatpush1.msra.mxu0 0.0
    %113 = vmatprep.subr.mxu0 0.0
    %114 = vmatpush1.msra.mxu0 0.0
    %115 = vmatprep.subr.mxu0 0.0
    %116 = vmatpush1.msra.mxu0 0.0
    %117 = vmatprep.subr.mxu0 0.0
    %118 = vmatpush1.msra.mxu0 0.0
    %119 = vmatprep.subr.mxu0 0.0
    %120 = vmatpush1.msra.mxu0 0.0
    %121 = vmatprep.subr.mxu0 0.0
    %122 = vmatpush1.msra.mxu0 0.0
    %123 = vmatprep.subr.mxu0 0.0
    %124 = vmatpush1.msra.mxu0 0.0
    %125 = vmatprep.subr.mxu0 0.0
    %126 = vmatpush1.msra.mxu0 0.0
    %127 = vmatprep.subr.mxu0 0.0
    %128 = vmatpush1.msra.mxu0 0.0
    %129 = vmatprep.subr.mxu0 0.0
    %130 = vmatpush1.msra.mxu0 0.0
    %131 = vmatprep.subr.mxu0 0.0
    %132 = vmatpush1.msra.mxu0 0.0
    %133 = vmatprep.subr.mxu0 0.0
    %134 = vmatpush1.msra.mxu0 0.0
    %135 = vmatprep.subr.mxu0 0.0
    %136 = vmatpush1.msra.mxu0 0.0
    %137 = vmatprep.subr.mxu0 0.0
    %138 = vmatpush1.msra.mxu0 0.0
    %139 = vmatprep.subr.mxu0 0.0
    %140 = vmatpush1.msra.mxu0 0.0
    %141 = vmatprep.subr.mxu0 0.0
    %142 = vmatpush1.msra.mxu0 0.0
    %143 = vmatprep.subr.mxu0 0.0
    %144 = vmatpush1.msra.mxu0 0.0
    %145 = vmatprep.subr.mxu0 0.0
    %146 = vmatpush1.msra.mxu0 0.0
    %147 = vmatprep.subr.mxu0 0.0
    %148 = vmatpush1.msra.mxu0 0.0
    %149 = vmatprep.subr.mxu0 0.0
    %150 = vmatpush1.msra.mxu0 0.0
    %151 = vmatprep.mubr.f32.mxu0 0.0
    %152 = vmatmul.mubr.f32.gmra.mrb[0].mxu0 %v72
    %v153 = vpop.f32.mrb[0].mxu0
    %v154 = vadd.f32 %v53, %v153
    %v155 = vpop.f32.mrb[0].mxu0
    %156 = vmatprep.mubr.f32.mxu0 0.0
    %157 = vmatmul.mubr.f32.gmra.mrb[0].mxu0 %v75
    %v158 = vpop.f32.mrb[0].mxu0
    %v159 = vadd.f32 %v58, %v158
    %v160 = vpop.f32.mrb[0].mxu0
    %161 = vmatprep.mubr.f32.mxu0 0.0
    %162 = vmatmul.mubr.f32.gmra.mrb[0].mxu0 %v78
    %v163 = vpop.f32.mrb[0].mxu0
    %v164 = vadd.f32 %v63, %v163
    %v165 = vpop.f32.mrb[0].mxu0
    %166 = vmatprep.mubr.f32.mxu0 0.0
    %167 = vmatmul.mubr.f32.gmra.mrb[0].mxu0 %v81
    %v168 = vpop.f32.mrb[0].mxu0
    %v169 = vadd.f32 %v68, %v168
    %v170 = vpop.f32.mrb[0].mxu0
    %171 = vdwg.mxu0
    %v172 = vtanh.pop %v154
    %v173 = vtanh.pop %v159
    %v174 = vtanh.pop %v164
    %v175 = vtanh.pop %v169
    %v176 = vld [vmem:[%s4] sm:$0xff]
    %v177 = vld [vmem:[%s4 + $0x8] sm:$0xff]
    %v178 = vld [vmem:[%s4 + $0x10] sm:$0xff]
    %v179 = vld [vmem:[%s4 + $0x18] sm:$0x3f]
    %181 = vset.pattern.permute.xlu0 0
    %182 = vperm.xlu0 %181, %v176
    %v183 = vpop.permute.xlu0 %182
    %186 = vset.pattern.permute.xlu0 0
    %187 = vperm.xlu0 %186, %v177
    %v188 = vpop.permute.xlu0 %187
    %191 = vset.pattern.permute.xlu0 0
    %192 = vperm.xlu0 %191, %v178
    %v193 = vpop.permute.xlu0 %192
    %196 = vset.pattern.permute.xlu0 0
    %197 = vperm.xlu0 %196, %v179
    %v198 = vpop.permute.xlu0 %197
    %v200 = vmul.f32 %v172, %v183
    %v201 = vmul.f32 %v173, %v188
    %v202 = vmul.f32 %v174, %v193
    %v203 = vmul.f32 %v175, %v198
    %v204 = vadd.f32 %v200, %v201
    %v205 = vadd.f32 %v204, %v202
    %vm206 = vcmask 1045504
    %v207 = vsel %vm206, %v203, 0.0
    %v208 = vadd.f32 %v205, %v207
    %v209 = vrot.slane %v208, 4
    %v210 = vadd.f32 %v208, %v209
    %v211 = vrot.slane %v210, 2
    %v212 = vadd.f32 %v210, %v211
    %v213 = vrot.slane %v212, 1
    %v214 = vadd.f32 %v212, %v213
    %v215 = vld [vmem:[%s5] sm:$0xff]
    %v216 = vld [vmem:[%s5 + $0x8] sm:$0xff]
    %v217 = vld [vmem:[%s5 + $0x10] sm:$0xf]
    %v218 = vld [vmem:[%s6] sm:$0xff]
    %v219 = vld [vmem:[%s6 + $0x8] sm:$0xff]
    %v220 = vld [vmem:[%s6 + $0x10] sm:$0xf]
    %222 = vset.pattern.permute.xlu0 0
    %223 = vperm.xlu0 %222, %v218
    %v224 = vpop.permute.xlu0 %223
    %227 = vset.pattern.permute.xlu0 0
    %228 = vperm.xlu0 %227, %v219
    %v229 = vpop.permute.xlu0 %228
    %232 = vset.pattern.permute.xlu0 0
    %233 = vperm.xlu0 %232, %v220
    %v234 = vpop.permute.xlu0 %233
    %vm236 = vcmask 244736
    %v238 = vsel %vm236, %v215, 0
    %v241 = vsel %vm236, %v216, 0
    %v244 = vsel %vm236, %v217, 0
    %v247 = vsel %vm206, %v175, 0
    %249 = vmatprep.subr.mxu0 0.0
    %250 = vmatpush1.msra.mxu0 %v172
    %251 = vmatprep.subr.mxu0 0.0
    %252 = vmatpush1.msra.mxu0 %v173
    %253 = vmatprep.subr.mxu0 0.0
    %254 = vmatpush1.msra.mxu0 %v174
    %255 = vmatprep.subr.mxu0 0.0
    %256 = vmatpush1.msra.mxu0 %v247
    %257 = vmatprep.subr.mxu0 0.0
    %258 = vmatpush1.msra.mxu0 0.0
    %259 = vmatprep.subr.mxu0 0.0
    %260 = vmatpush1.msra.mxu0 0.0
    %261 = vmatprep.subr.mxu0 0.0
    %262 = vmatpush1.msra.mxu0 0.0
    %263 = vmatprep.subr.mxu0 0.0
    %264 = vmatpush1.msra.mxu0 0.0
    %265 = vmatprep.subr.mxu0 0.0
    %266 = vmatpush1.msra.mxu0 0.0
    %267 = vmatprep.subr.mxu0 0.0
    %268 = vmatpush1.msra.mxu0 0.0
    %269 = vmatprep.subr.mxu0 0.0
    %270 = vmatpush1.msra.mxu0 0.0
    %271 = vmatprep.subr.mxu0 0.0
    %272 = vmatpush1.msra.mxu0 0.0
    %273 = vmatprep.subr.mxu0 0.0
    %274 = vmatpush1.msra.mxu0 0.0
    %275 = vmatprep.subr.mxu0 0.0
    %276 = vmatpush1.msra.mxu0 0.0
    %277 = vmatprep.subr.mxu0 0.0
    %278 = vmatpush1.msra.mxu0 0.0
    %279 = vmatprep.subr.mxu0 0.0
    %280 = vmatpush1.msra.mxu0 0.0
    %281 = vmatprep.subr.mxu0 0.0
    %282 = vmatpush1.msra.mxu0 0.0
    %283 = vmatprep.subr.mxu0 0.0
    %284 = vmatpush1.msra.mxu0 0.0
    %285 = vmatprep.subr.mxu0 0.0
    %286 = vmatpush1.msra.mxu0 0.0
    %287 = vmatprep.subr.mxu0 0.0
    %288 = vmatpush1.msra.mxu0 0.0
    %289 = vmatprep.subr.mxu0 0.0
    %290 = vmatpush1.msra.mxu0 0.0
    %291 = vmatprep.subr.mxu0 0.0
    %292 = vmatpush1.msra.mxu0 0.0
    %293 = vmatprep.subr.mxu0 0.0
    %294 = vmatpush1.msra.mxu0 0.0
    %295 = vmatprep.subr.mxu0 0.0
    %296 = vmatpush1.msra.mxu0 0.0
    %297 = vmatprep.subr.mxu0 0.0
    %298 = vmatpush1.msra.mxu0 0.0
    %299 = vmatprep.subr.mxu0 0.0
    %300 = vmatpush1.msra.mxu0 0.0
    %301 = vmatprep.subr.mxu0 0.0
    %302 = vmatpush1.msra.mxu0 0.0
    %303 = vmatprep.subr.mxu0 0.0
    %304 = vmatpush1.msra.mxu0 0.0
    %305 = vmatprep.subr.mxu0 0.0
    %306 = vmatpush1.msra.mxu0 0.0
    %307 = vmatprep.subr.mxu0 0.0
    %308 = vmatpush1.msra.mxu0 0.0
    %309 = vmatprep.subr.mxu0 0.0
    %310 = vmatpush1.msra.mxu0 0.0
    %311 = vmatprep.subr.mxu0 0.0
    %312 = vmatpush1.msra.mxu0 0.0
    %313 = vmatprep.mubr.f32.mxu0 0.0
    %314 = vmatmul.mubr.f32.gmra.mrb[0].mxu0 %v238
    %v315 = vpop.f32.mrb[0].mxu0
    %v316 = vadd.f32 %v224, %v315
    %v317 = vpop.f32.mrb[0].mxu0
    %318 = vmatprep.mubr.f32.mxu0 0.0
    %319 = vmatmul.mubr.f32.gmra.mrb[0].mxu0 %v241
    %v320 = vpop.f32.mrb[0].mxu0
    %v321 = vadd.f32 %v229, %v320
    %v322 = vpop.f32.mrb[0].mxu0
    %323 = vmatprep.mubr.f32.mxu0 0.0
    %324 = vmatmul.mubr.f32.gmra.mrb[0].mxu0 %v244
    %v325 = vpop.f32.mrb[0].mxu0
    %v326 = vadd.f32 %v234, %v325
    %v327 = vpop.f32.mrb[0].mxu0
    %328 = vdwg.mxu0
    %v329 = vtanh.pop %v316
    %v330 = vtanh.pop %v321
    %v331 = vtanh.pop %v326
    %v332 = vld [vmem:[%s7] sm:$0xff]
    %v333 = vld [vmem:[%s7 + $0x8] sm:$0x3]
    %v334 = vld [vmem:[%s8] sm:$0xff]
    %v335 = vld [vmem:[%s8 + $0x8] sm:$0x3]
    %337 = vset.pattern.permute.xlu0 0
    %338 = vperm.xlu0 %337, %v334
    %v339 = vpop.permute.xlu0 %338
    %342 = vset.pattern.permute.xlu0 0
    %343 = vperm.xlu0 %342, %v335
    %v344 = vpop.permute.xlu0 %343
    %v347 = vsel %vm70, %v332, 0
    %v350 = vsel %vm70, %v333, 0
    %v353 = vsel %vm83, %v331, 0
    %355 = vmatprep.subr.mxu0 0.0
    %356 = vmatpush1.msra.mxu0 %v329
    %357 = vmatprep.subr.mxu0 0.0
    %358 = vmatpush1.msra.mxu0 %v330
    %359 = vmatprep.subr.mxu0 0.0
    %360 = vmatpush1.msra.mxu0 %v353
    %361 = vmatprep.subr.mxu0 0.0
    %362 = vmatpush1.msra.mxu0 0.0
    %363 = vmatprep.subr.mxu0 0.0
    %364 = vmatpush1.msra.mxu0 0.0
    %365 = vmatprep.subr.mxu0 0.0
    %366 = vmatpush1.msra.mxu0 0.0
    %367 = vmatprep.subr.mxu0 0.0
    %368 = vmatpush1.msra.mxu0 0.0
    %369 = vmatprep.subr.mxu0 0.0
    %370 = vmatpush1.msra.mxu0 0.0
    %371 = vmatprep.subr.mxu0 0.0
    %372 = vmatpush1.msra.mxu0 0.0
    %373 = vmatprep.subr.mxu0 0.0
    %374 = vmatpush1.msra.mxu0 0.0
    %375 = vmatprep.subr.mxu0 0.0
    %376 = vmatpush1.msra.mxu0 0.0
    %377 = vmatprep.subr.mxu0 0.0
    %378 = vmatpush1.msra.mxu0 0.0
    %379 = vmatprep.subr.mxu0 0.0
    %380 = vmatpush1.msra.mxu0 0.0
    %381 = vmatprep.subr.mxu0 0.0
    %382 = vmatpush1.msra.mxu0 0.0
    %383 = vmatprep.subr.mxu0 0.0
    %384 = vmatpush1.msra.mxu0 0.0
    %385 = vmatprep.subr.mxu0 0.0
    %386 = vmatpush1.msra.mxu0 0.0
    %387 = vmatprep.subr.mxu0 0.0
    %388 = vmatpush1.msra.mxu0 0.0
    %389 = vmatprep.subr.mxu0 0.0
    %390 = vmatpush1.msra.mxu0 0.0
    %391 = vmatprep.subr.mxu0 0.0
    %392 = vmatpush1.msra.mxu0 0.0
    %393 = vmatprep.subr.mxu0 0.0
    %394 = vmatpush1.msra.mxu0 0.0
    %395 = vmatprep.subr.mxu0 0.0
    %396 = vmatpush1.msra.mxu0 0.0
    %397 = vmatprep.subr.mxu0 0.0
    %398 = vmatpush1.msra.mxu0 0.0
    %399 = vmatprep.subr.mxu0 0.0
    %400 = vmatpush1.msra.mxu0 0.0
    %401 = vmatprep.subr.mxu0 0.0
    %402 = vmatpush1.msra.mxu0 0.0
    %403 = vmatprep.subr.mxu0 0.0
    %404 = vmatpush1.msra.mxu0 0.0
    %405 = vmatprep.subr.mxu0 0.0
    %406 = vmatpush1.msra.mxu0 0.0
    %407 = vmatprep.subr.mxu0 0.0
    %408 = vmatpush1.msra.mxu0 0.0
    %409 = vmatprep.subr.mxu0 0.0
    %410 = vmatpush1.msra.mxu0 0.0
    %411 = vmatprep.subr.mxu0 0.0
    %412 = vmatpush1.msra.mxu0 0.0
    %413 = vmatprep.subr.mxu0 0.0
    %414 = vmatpush1.msra.mxu0 0.0
    %415 = vmatprep.subr.mxu0 0.0
    %416 = vmatpush1.msra.mxu0 0.0
    %417 = vmatprep.subr.mxu0 0.0
    %418 = vmatpush1.msra.mxu0 0.0
    %419 = vmatprep.mubr.f32.mxu0 0.0
    %420 = vmatmul.mubr.f32.gmra.mrb[0].mxu0 %v347
    %v421 = vpop.f32.mrb[0].mxu0
    %v422 = vadd.f32 %v339, %v421
    %v423 = vpop.f32.mrb[0].mxu0
    %424 = vmatprep.mubr.f32.mxu0 0.0
    %425 = vmatmul.mubr.f32.gmra.mrb[0].mxu0 %v350
    %v426 = vpop.f32.mrb[0].mxu0
    %v427 = vadd.f32 %v344, %v426
    %v428 = vpop.f32.mrb[0].mxu0
    %429 = vdwg.mxu0
    %v430 = vtanh.pop %v422
    %v431 = vtanh.pop %v427
    %v432 = vld [vmem:[%s9] sm:$0xff]
    %v433 = vld [vmem:[%s9 + $0x8] sm:$0x3]
    %435 = vset.pattern.permute.xlu0 0
    %436 = vperm.xlu0 %435, %v432
    %v437 = vpop.permute.xlu0 %436
    %440 = vset.pattern.permute.xlu0 0
    %441 = vperm.xlu0 %440, %v433
    %v442 = vpop.permute.xlu0 %441
    %v444 = vmul.f32 %v430, %v437
    %v445 = vmul.f32 %v431, %v442
    %vm446 = vcmask 1041408
    %v447 = vsel %vm446, %v445, 0.0
    %v448 = vadd.f32 %v444, %v447
    %v449 = vrot.slane %v448, 4
    %v450 = vadd.f32 %v448, %v449
    %v451 = vrot.slane %v450, 2
    %v452 = vadd.f32 %v450, %v451
    %v453 = vrot.slane %v452, 1
    %v454 = vadd.f32 %v452, %v453
    %v455 = vadd.f32 %v214, %v454
    %v456 = vld [vmem:[%s10] sm:$0x1]
    %458 = vset.pattern.permute.xlu0 0
    %459 = vperm.xlu0 %458, %v456
    %v460 = vpop.permute.xlu0 %459
    %v462 = vlaneseq
    %v463 = vshrl.u32 %v462, 7
    %v464 = vsub.s32 0, %v463
    %v465 = vrot.slane %v460, %v464
    %v466 = vadd.f32 %v455, %v465
    %s467 = scalar_lea.vmem %s1, 32
    %v468 = vld [vmem:[%s467] sm:$0xff]
    %v469 = vld [vmem:[%s467 + $0x8] sm:$0xff]
    %v470 = vld [vmem:[%s467 + $0x10] sm:$0xff]
    %v471 = vld [vmem:[%s467 + $0x18] sm:$0x3f]
    %s472 = scalar_lea.vmem %s3, 32
    %v473 = vld [vmem:[%s472] sm:$0xff]
    %v474 = vld [vmem:[%s472 + $0x8] sm:$0xff]
    %v475 = vld [vmem:[%s472 + $0x10] sm:$0xff]
    %v476 = vld [vmem:[%s472 + $0x18] sm:$0x3f]
    %478 = vset.pattern.permute.xlu0 0
    %479 = vperm.xlu0 %478, %v473
    %v480 = vpop.permute.xlu0 %479
    %483 = vset.pattern.permute.xlu0 0
    %484 = vperm.xlu0 %483, %v474
    %v485 = vpop.permute.xlu0 %484
    %488 = vset.pattern.permute.xlu0 0
    %489 = vperm.xlu0 %488, %v475
    %v490 = vpop.permute.xlu0 %489
    %493 = vset.pattern.permute.xlu0 0
    %494 = vperm.xlu0 %493, %v476
    %v495 = vpop.permute.xlu0 %494
    %v498 = vsel %vm70, %v468, 0
    %v501 = vsel %vm70, %v469, 0
    %v504 = vsel %vm70, %v470, 0
    %v507 = vsel %vm70, %v471, 0
    %509 = vmatprep.subr.mxu0 0.0
    %510 = vmatpush1.msra.mxu0 %v39
    %511 = vmatprep.subr.mxu0 0.0
    %512 = vmatpush1.msra.mxu0 %v40
    %513 = vmatprep.subr.mxu0 0.0
    %514 = vmatpush1.msra.mxu0 %v85
    %515 = vmatprep.subr.mxu0 0.0
    %516 = vmatpush1.msra.mxu0 0.0
    %517 = vmatprep.subr.mxu0 0.0
    %518 = vmatpush1.msra.mxu0 0.0
    %519 = vmatprep.subr.mxu0 0.0
    %520 = vmatpush1.msra.mxu0 0.0
    %521 = vmatprep.subr.mxu0 0.0
    %522 = vmatpush1.msra.mxu0 0.0
    %523 = vmatprep.subr.mxu0 0.0
    %524 = vmatpush1.msra.mxu0 0.0
    %525 = vmatprep.subr.mxu0 0.0
    %526 = vmatpush1.msra.mxu0 0.0
    %527 = vmatprep.subr.mxu0 0.0
    %528 = vmatpush1.msra.mxu0 0.0
    %529 = vmatprep.subr.mxu0 0.0
    %530 = vmatpush1.msra.mxu0 0.0
    %531 = vmatprep.subr.mxu0 0.0
    %532 = vmatpush1.msra.mxu0 0.0
    %533 = vmatprep.subr.mxu0 0.0
    %534 = vmatpush1.msra.mxu0 0.0
    %535 = vmatprep.subr.mxu0 0.0
    %536 = vmatpush1.msra.mxu0 0.0
    %537 = vmatprep.subr.mxu0 0.0
    %538 = vmatpush1.msra.mxu0 0.0
    %539 = vmatprep.subr.mxu0 0.0
    %540 = vmatpush1.msra.mxu0 0.0
    %541 = vmatprep.subr.mxu0 0.0
    %542 = vmatpush1.msra.mxu0 0.0
    %543 = vmatprep.subr.mxu0 0.0
    %544 = vmatpush1.msra.mxu0 0.0
    %545 = vmatprep.subr.mxu0 0.0
    %546 = vmatpush1.msra.mxu0 0.0
    %547 = vmatprep.subr.mxu0 0.0
    %548 = vmatpush1.msra.mxu0 0.0
    %549 = vmatprep.subr.mxu0 0.0
    %550 = vmatpush1.msra.mxu0 0.0
    %551 = vmatprep.subr.mxu0 0.0
    %552 = vmatpush1.msra.mxu0 0.0
    %553 = vmatprep.subr.mxu0 0.0
    %554 = vmatpush1.msra.mxu0 0.0
    %555 = vmatprep.subr.mxu0 0.0
    %556 = vmatpush1.msra.mxu0 0.0
    %557 = vmatprep.subr.mxu0 0.0
    %558 = vmatpush1.msra.mxu0 0.0
    %559 = vmatprep.subr.mxu0 0.0
    %560 = vmatpush1.msra.mxu0 0.0
    %561 = vmatprep.subr.mxu0 0.0
    %562 = vmatpush1.msra.mxu0 0.0
    %563 = vmatprep.subr.mxu0 0.0
    %564 = vmatpush1.msra.mxu0 0.0
    %565 = vmatprep.subr.mxu0 0.0
    %566 = vmatpush1.msra.mxu0 0.0
    %567 = vmatprep.subr.mxu0 0.0
    %568 = vmatpush1.msra.mxu0 0.0
    %569 = vmatprep.subr.mxu0 0.0
    %570 = vmatpush1.msra.mxu0 0.0
    %571 = vmatprep.subr.mxu0 0.0
    %572 = vmatpush1.msra.mxu0 0.0
    %573 = vmatprep.mubr.f32.mxu0 0.0
    %574 = vmatmul.mubr.f32.gmra.mrb[0].mxu0 %v498
    %v575 = vpop.f32.mrb[0].mxu0
    %v576 = vadd.f32 %v480, %v575
    %v577 = vpop.f32.mrb[0].mxu0
    %578 = vmatprep.mubr.f32.mxu0 0.0
    %579 = vmatmul.mubr.f32.gmra.mrb[0].mxu0 %v501
    %v580 = vpop.f32.mrb[0].mxu0
    %v581 = vadd.f32 %v485, %v580
    %v582 = vpop.f32.mrb[0].mxu0
    %583 = vmatprep.mubr.f32.mxu0 0.0
    %584 = vmatmul.mubr.f32.gmra.mrb[0].mxu0 %v504
    %v585 = vpop.f32.mrb[0].mxu0
    %v586 = vadd.f32 %v490, %v585
    %v587 = vpop.f32.mrb[0].mxu0
    %588 = vmatprep.mubr.f32.mxu0 0.0
    %589 = vmatmul.mubr.f32.gmra.mrb[0].mxu0 %v507
    %v590 = vpop.f32.mrb[0].mxu0
    %v591 = vadd.f32 %v495, %v590
    %v592 = vpop.f32.mrb[0].mxu0
    %593 = vdwg.mxu0
    %s594 = scalar_lea.vmem %s2, 64
    %v595 = vld [vmem:[%s594] sm:$0xff]
    %v596 = vld [vmem:[%s594 + $0x8] sm:$0xff]
    %v597 = vld [vmem:[%s594 + $0x10] sm:$0xff]
    %v598 = vld [vmem:[%s594 + $0x18] sm:$0x3f]
    %600 = vset.pattern.permute.xlu0 0
    %601 = vperm.xlu0 %600, %v595
    %v602 = vpop.permute.xlu0 %601
    %605 = vset.pattern.permute.xlu0 0
    %606 = vperm.xlu0 %605, %v596
    %v607 = vpop.permute.xlu0 %606
    %610 = vset.pattern.permute.xlu0 0
    %611 = vperm.xlu0 %610, %v597
    %v612 = vpop.permute.xlu0 %611
    %615 = vset.pattern.permute.xlu0 0
    %616 = vperm.xlu0 %615, %v598
    %v617 = vpop.permute.xlu0 %616
    %v619 = vmul.f32 %v602, %v466
    %v620 = vmul.f32 %v607, %v466
    %v621 = vmul.f32 %v612, %v466
    %v622 = vmul.f32 %v617, %v466
    %v623 = vadd.f32 %v576, %v619
    %v624 = vadd.f32 %v581, %v620
    %v625 = vadd.f32 %v586, %v621
    %v626 = vadd.f32 %v591, %v622
    %v627 = vtanh.pop %v623
    %v628 = vtanh.pop %v624
    %v629 = vtanh.pop %v625
    %v630 = vtanh.pop %v626
    %s631 = scalar_lea.vmem %s4, 32
    %v632 = vld [vmem:[%s631] sm:$0xff]
    %v633 = vld [vmem:[%s631 + $0x8] sm:$0xff]
    %v634 = vld [vmem:[%s631 + $0x10] sm:$0xff]
    %v635 = vld [vmem:[%s631 + $0x18] sm:$0x3f]
    %637 = vset.pattern.permute.xlu0 0
    %638 = vperm.xlu0 %637, %v632
    %v639 = vpop.permute.xlu0 %638
    %642 = vset.pattern.permute.xlu0 0
    %643 = vperm.xlu0 %642, %v633
    %v644 = vpop.permute.xlu0 %643
    %647 = vset.pattern.permute.xlu0 0
    %648 = vperm.xlu0 %647, %v634
    %v649 = vpop.permute.xlu0 %648
    %652 = vset.pattern.permute.xlu0 0
    %653 = vperm.xlu0 %652, %v635
    %v654 = vpop.permute.xlu0 %653
    %v656 = vmul.f32 %v627, %v639
    %v657 = vmul.f32 %v628, %v644
    %v658 = vmul.f32 %v629, %v649
    %v659 = vmul.f32 %v630, %v654
    %v660 = vadd.f32 %v656, %v657
    %v661 = vadd.f32 %v660, %v658
    %v662 = vsel %vm206, %v659, 0.0
    %v663 = vadd.f32 %v661, %v662
    %v664 = vrot.slane %v663, 4
    %v665 = vadd.f32 %v663, %v664
    %v666 = vrot.slane %v665, 2
    %v667 = vadd.f32 %v665, %v666
    %v668 = vrot.slane %v667, 1
    %v669 = vadd.f32 %v667, %v668
    %s670 = scalar_lea.vmem %s5, 24
    %v671 = vld [vmem:[%s670] sm:$0xff]
    %v672 = vld [vmem:[%s670 + $0x8] sm:$0xff]
    %v673 = vld [vmem:[%s670 + $0x10] sm:$0xf]
    %s674 = scalar_lea.vmem %s6, 24
    %v675 = vld [vmem:[%s674] sm:$0xff]
    %v676 = vld [vmem:[%s674 + $0x8] sm:$0xff]
    %v677 = vld [vmem:[%s674 + $0x10] sm:$0xf]
    %679 = vset.pattern.permute.xlu0 0
    %680 = vperm.xlu0 %679, %v675
    %v681 = vpop.permute.xlu0 %680
    %684 = vset.pattern.permute.xlu0 0
    %685 = vperm.xlu0 %684, %v676
    %v686 = vpop.permute.xlu0 %685
    %689 = vset.pattern.permute.xlu0 0
    %690 = vperm.xlu0 %689, %v677
    %v691 = vpop.permute.xlu0 %690
    %v694 = vsel %vm236, %v671, 0
    %v697 = vsel %vm236, %v672, 0
    %v700 = vsel %vm236, %v673, 0
    %v703 = vsel %vm206, %v630, 0
    %705 = vmatprep.subr.mxu0 0.0
    %706 = vmatpush1.msra.mxu0 %v627
    %707 = vmatprep.subr.mxu0 0.0
    %708 = vmatpush1.msra.mxu0 %v628
    %709 = vmatprep.subr.mxu0 0.0
    %710 = vmatpush1.msra.mxu0 %v629
    %711 = vmatprep.subr.mxu0 0.0
    %712 = vmatpush1.msra.mxu0 %v703
    %713 = vmatprep.subr.mxu0 0.0
    %714 = vmatpush1.msra.mxu0 0.0
    %715 = vmatprep.subr.mxu0 0.0
    %716 = vmatpush1.msra.mxu0 0.0
    %717 = vmatprep.subr.mxu0 0.0
    %718 = vmatpush1.msra.mxu0 0.0
    %719 = vmatprep.subr.mxu0 0.0
    %720 = vmatpush1.msra.mxu0 0.0
    %721 = vmatprep.subr.mxu0 0.0
    %722 = vmatpush1.msra.mxu0 0.0
    %723 = vmatprep.subr.mxu0 0.0
    %724 = vmatpush1.msra.mxu0 0.0
    %725 = vmatprep.subr.mxu0 0.0
    %726 = vmatpush1.msra.mxu0 0.0
    %727 = vmatprep.subr.mxu0 0.0
    %728 = vmatpush1.msra.mxu0 0.0
    %729 = vmatprep.subr.mxu0 0.0
    %730 = vmatpush1.msra.mxu0 0.0
    %731 = vmatprep.subr.mxu0 0.0
    %732 = vmatpush1.msra.mxu0 0.0
    %733 = vmatprep.subr.mxu0 0.0
    %734 = vmatpush1.msra.mxu0 0.0
    %735 = vmatprep.subr.mxu0 0.0
    %736 = vmatpush1.msra.mxu0 0.0
    %737 = vmatprep.subr.mxu0 0.0
    %738 = vmatpush1.msra.mxu0 0.0
    %739 = vmatprep.subr.mxu0 0.0
    %740 = vmatpush1.msra.mxu0 0.0
    %741 = vmatprep.subr.mxu0 0.0
    %742 = vmatpush1.msra.mxu0 0.0
    %743 = vmatprep.subr.mxu0 0.0
    %744 = vmatpush1.msra.mxu0 0.0
    %745 = vmatprep.subr.mxu0 0.0
    %746 = vmatpush1.msra.mxu0 0.0
    %747 = vmatprep.subr.mxu0 0.0
    %748 = vmatpush1.msra.mxu0 0.0
    %749 = vmatprep.subr.mxu0 0.0
    %750 = vmatpush1.msra.mxu0 0.0
    %751 = vmatprep.subr.mxu0 0.0
    %752 = vmatpush1.msra.mxu0 0.0
    %753 = vmatprep.subr.mxu0 0.0
    %754 = vmatpush1.msra.mxu0 0.0
    %755 = vmatprep.subr.mxu0 0.0
    %756 = vmatpush1.msra.mxu0 0.0
    %757 = vmatprep.subr.mxu0 0.0
    %758 = vmatpush1.msra.mxu0 0.0
    %759 = vmatprep.subr.mxu0 0.0
    %760 = vmatpush1.msra.mxu0 0.0
    %761 = vmatprep.subr.mxu0 0.0
    %762 = vmatpush1.msra.mxu0 0.0
    %763 = vmatprep.subr.mxu0 0.0
    %764 = vmatpush1.msra.mxu0 0.0
    %765 = vmatprep.subr.mxu0 0.0
    %766 = vmatpush1.msra.mxu0 0.0
    %767 = vmatprep.subr.mxu0 0.0
    %768 = vmatpush1.msra.mxu0 0.0
    %769 = vmatprep.mubr.f32.mxu0 0.0
    %770 = vmatmul.mubr.f32.gmra.mrb[0].mxu0 %v694
    %v771 = vpop.f32.mrb[0].mxu0
    %v772 = vadd.f32 %v681, %v771
    %v773 = vpop.f32.mrb[0].mxu0
    %774 = vmatprep.mubr.f32.mxu0 0.0
    %775 = vmatmul.mubr.f32.gmra.mrb[0].mxu0 %v697
    %v776 = vpop.f32.mrb[0].mxu0
    %v777 = vadd.f32 %v686, %v776
    %v778 = vpop.f32.mrb[0].mxu0
    %779 = vmatprep.mubr.f32.mxu0 0.0
    %780 = vmatmul.mubr.f32.gmra.mrb[0].mxu0 %v700
    %v781 = vpop.f32.mrb[0].mxu0
    %v782 = vadd.f32 %v691, %v781
    %v783 = vpop.f32.mrb[0].mxu0
    %784 = vdwg.mxu0
    %v785 = vtanh.pop %v772
    %v786 = vtanh.pop %v777
    %v787 = vtanh.pop %v782
    %s788 = scalar_lea.vmem %s7, 16
    %v789 = vld [vmem:[%s788] sm:$0xff]
    %v790 = vld [vmem:[%s788 + $0x8] sm:$0x3]
    %s791 = scalar_lea.vmem %s8, 16
    %v792 = vld [vmem:[%s791] sm:$0xff]
    %v793 = vld [vmem:[%s791 + $0x8] sm:$0x3]
    %795 = vset.pattern.permute.xlu0 0
    %796 = vperm.xlu0 %795, %v792
    %v797 = vpop.permute.xlu0 %796
    %800 = vset.pattern.permute.xlu0 0
    %801 = vperm.xlu0 %800, %v793
    %v802 = vpop.permute.xlu0 %801
    %v805 = vsel %vm70, %v789, 0
    %v808 = vsel %vm70, %v790, 0
    %v811 = vsel %vm83, %v787, 0
    %813 = vmatprep.subr.mxu0 0.0
    %814 = vmatpush1.msra.mxu0 %v785
    %815 = vmatprep.subr.mxu0 0.0
    %816 = vmatpush1.msra.mxu0 %v786
    %817 = vmatprep.subr.mxu0 0.0
    %818 = vmatpush1.msra.mxu0 %v811
    %819 = vmatprep.subr.mxu0 0.0
    %820 = vmatpush1.msra.mxu0 0.0
    %821 = vmatprep.subr.mxu0 0.0
    %822 = vmatpush1.msra.mxu0 0.0
    %823 = vmatprep.subr.mxu0 0.0
    %824 = vmatpush1.msra.mxu0 0.0
    %825 = vmatprep.subr.mxu0 0.0
    %826 = vmatpush1.msra.mxu0 0.0
    %827 = vmatprep.subr.mxu0 0.0
    %828 = vmatpush1.msra.mxu0 0.0
    %829 = vmatprep.subr.mxu0 0.0
    %830 = vmatpush1.msra.mxu0 0.0
    %831 = vmatprep.subr.mxu0 0.0
    %832 = vmatpush1.msra.mxu0 0.0
    %833 = vmatprep.subr.mxu0 0.0
    %834 = vmatpush1.msra.mxu0 0.0
    %835 = vmatprep.subr.mxu0 0.0
    %836 = vmatpush1.msra.mxu0 0.0
    %837 = vmatprep.subr.mxu0 0.0
    %838 = vmatpush1.msra.mxu0 0.0
    %839 = vmatprep.subr.mxu0 0.0
    %840 = vmatpush1.msra.mxu0 0.0
    %841 = vmatprep.subr.mxu0 0.0
    %842 = vmatpush1.msra.mxu0 0.0
    %843 = vmatprep.subr.mxu0 0.0
    %844 = vmatpush1.msra.mxu0 0.0
    %845 = vmatprep.subr.mxu0 0.0
    %846 = vmatpush1.msra.mxu0 0.0
    %847 = vmatprep.subr.mxu0 0.0
    %848 = vmatpush1.msra.mxu0 0.0
    %849 = vmatprep.subr.mxu0 0.0
    %850 = vmatpush1.msra.mxu0 0.0
    %851 = vmatprep.subr.mxu0 0.0
    %852 = vmatpush1.msra.mxu0 0.0
    %853 = vmatprep.subr.mxu0 0.0
    %854 = vmatpush1.msra.mxu0 0.0
    %855 = vmatprep.subr.mxu0 0.0
    %856 = vmatpush1.msra.mxu0 0.0
    %857 = vmatprep.subr.mxu0 0.0
    %858 = vmatpush1.msra.mxu0 0.0
    %859 = vmatprep.subr.mxu0 0.0
    %860 = vmatpush1.msra.mxu0 0.0
    %861 = vmatprep.subr.mxu0 0.0
    %862 = vmatpush1.msra.mxu0 0.0
    %863 = vmatprep.subr.mxu0 0.0
    %864 = vmatpush1.msra.mxu0 0.0
    %865 = vmatprep.subr.mxu0 0.0
    %866 = vmatpush1.msra.mxu0 0.0
    %867 = vmatprep.subr.mxu0 0.0
    %868 = vmatpush1.msra.mxu0 0.0
    %869 = vmatprep.subr.mxu0 0.0
    %870 = vmatpush1.msra.mxu0 0.0
    %871 = vmatprep.subr.mxu0 0.0
    %872 = vmatpush1.msra.mxu0 0.0
    %873 = vmatprep.subr.mxu0 0.0
    %874 = vmatpush1.msra.mxu0 0.0
    %875 = vmatprep.subr.mxu0 0.0
    %876 = vmatpush1.msra.mxu0 0.0
    %877 = vmatprep.mubr.f32.mxu0 0.0
    %878 = vmatmul.mubr.f32.gmra.mrb[0].mxu0 %v805
    %v879 = vpop.f32.mrb[0].mxu0
    %v880 = vadd.f32 %v797, %v879
    %v881 = vpop.f32.mrb[0].mxu0
    %882 = vmatprep.mubr.f32.mxu0 0.0
    %883 = vmatmul.mubr.f32.gmra.mrb[0].mxu0 %v808
    %v884 = vpop.f32.mrb[0].mxu0
    %v885 = vadd.f32 %v802, %v884
    %v886 = vpop.f32.mrb[0].mxu0
    %887 = vdwg.mxu0
    %v888 = vtanh.pop %v880
    %v889 = vtanh.pop %v885
    %s890 = scalar_lea.vmem %s9, 16
    %v891 = vld [vmem:[%s890] sm:$0xff]
    %v892 = vld [vmem:[%s890 + $0x8] sm:$0x3]
    %894 = vset.pattern.permute.xlu0 0
    %895 = vperm.xlu0 %894, %v891
    %v896 = vpop.permute.xlu0 %895
    %899 = vset.pattern.permute.xlu0 0
    %900 = vperm.xlu0 %899, %v892
    %v901 = vpop.permute.xlu0 %900
    %v903 = vmul.f32 %v888, %v896
    %v904 = vmul.f32 %v889, %v901
    %v905 = vsel %vm446, %v904, 0.0
    %v906 = vadd.f32 %v903, %v905
    %v907 = vrot.slane %v906, 4
    %v908 = vadd.f32 %v906, %v907
    %v909 = vrot.slane %v908, 2
    %v910 = vadd.f32 %v908, %v909
    %v911 = vrot.slane %v910, 1
    %v912 = vadd.f32 %v910, %v911
    %v913 = vadd.f32 %v669, %v912
    %s914 = scalar_lea.vmem %s10, 1
    %v915 = vld [vmem:[%s914] sm:$0x1]
    %917 = vset.pattern.permute.xlu0 0
    %918 = vperm.xlu0 %917, %v915
    %v919 = vpop.permute.xlu0 %918
    %v921 = vlaneseq
    %v922 = vshrl.u32 %v921, 7
    %v923 = vsub.s32 0, %v922
    %v924 = vrot.slane %v919, %v923
    %v925 = vadd.f32 %v913, %v924
    %v926 = vadd.f32 %v925, 0.0
    %s927 = scalar_lea.vmem %s1, 64
    %v928 = vld [vmem:[%s927] sm:$0xff]
    %v929 = vld [vmem:[%s927 + $0x8] sm:$0xff]
    %v930 = vld [vmem:[%s927 + $0x10] sm:$0xff]
    %v931 = vld [vmem:[%s927 + $0x18] sm:$0x3f]
    %s932 = scalar_lea.vmem %s3, 64
    %v933 = vld [vmem:[%s932] sm:$0xff]
    %v934 = vld [vmem:[%s932 + $0x8] sm:$0xff]
    %v935 = vld [vmem:[%s932 + $0x10] sm:$0xff]
    %v936 = vld [vmem:[%s932 + $0x18] sm:$0x3f]
    %938 = vset.pattern.permute.xlu0 0
    %939 = vperm.xlu0 %938, %v933
    %v940 = vpop.permute.xlu0 %939
    %943 = vset.pattern.permute.xlu0 0
    %944 = vperm.xlu0 %943, %v934
    %v945 = vpop.permute.xlu0 %944
    %948 = vset.pattern.permute.xlu0 0
    %949 = vperm.xlu0 %948, %v935
    %v950 = vpop.permute.xlu0 %949
    %953 = vset.pattern.permute.xlu0 0
    %954 = vperm.xlu0 %953, %v936
    %v955 = vpop.permute.xlu0 %954
    %v958 = vsel %vm70, %v928, 0
    %v961 = vsel %vm70, %v929, 0
    %v964 = vsel %vm70, %v930, 0
    %v967 = vsel %vm70, %v931, 0
    %969 = vmatprep.subr.mxu0 0.0
    %970 = vmatpush1.msra.mxu0 %v39
    %971 = vmatprep.subr.mxu0 0.0
    %972 = vmatpush1.msra.mxu0 %v40
    %973 = vmatprep.subr.mxu0 0.0
    %974 = vmatpush1.msra.mxu0 %v85
    %975 = vmatprep.subr.mxu0 0.0
    %976 = vmatpush1.msra.mxu0 0.0
    %977 = vmatprep.subr.mxu0 0.0
    %978 = vmatpush1.msra.mxu0 0.0
    %979 = vmatprep.subr.mxu0 0.0
    %980 = vmatpush1.msra.mxu0 0.0
    %981 = vmatprep.subr.mxu0 0.0
    %982 = vmatpush1.msra.mxu0 0.0
    %983 = vmatprep.subr.mxu0 0.0
    %984 = vmatpush1.msra.mxu0 0.0
    %985 = vmatprep.subr.mxu0 0.0
    %986 = vmatpush1.msra.mxu0 0.0
    %987 = vmatprep.subr.mxu0 0.0
    %988 = vmatpush1.msra.mxu0 0.0
    %989 = vmatprep.subr.mxu0 0.0
    %990 = vmatpush1.msra.mxu0 0.0
    %991 = vmatprep.subr.mxu0 0.0
    %992 = vmatpush1.msra.mxu0 0.0
    %993 = vmatprep.subr.mxu0 0.0
    %994 = vmatpush1.msra.mxu0 0.0
    %995 = vmatprep.subr.mxu0 0.0
    %996 = vmatpush1.msra.mxu0 0.0
    %997 = vmatprep.subr.mxu0 0.0
    %998 = vmatpush1.msra.mxu0 0.0
    %999 = vmatprep.subr.mxu0 0.0
    %1000 = vmatpush1.msra.mxu0 0.0
    %1001 = vmatprep.subr.mxu0 0.0
    %1002 = vmatpush1.msra.mxu0 0.0
    %1003 = vmatprep.subr.mxu0 0.0
    %1004 = vmatpush1.msra.mxu0 0.0
    %1005 = vmatprep.subr.mxu0 0.0
    %1006 = vmatpush1.msra.mxu0 0.0
    %1007 = vmatprep.subr.mxu0 0.0
    %1008 = vmatpush1.msra.mxu0 0.0
    %1009 = vmatprep.subr.mxu0 0.0
    %1010 = vmatpush1.msra.mxu0 0.0
    %1011 = vmatprep.subr.mxu0 0.0
    %1012 = vmatpush1.msra.mxu0 0.0
    %1013 = vmatprep.subr.mxu0 0.0
    %1014 = vmatpush1.msra.mxu0 0.0
    %1015 = vmatprep.subr.mxu0 0.0
    %1016 = vmatpush1.msra.mxu0 0.0
    %1017 = vmatprep.subr.mxu0 0.0
    %1018 = vmatpush1.msra.mxu0 0.0
    %1019 = vmatprep.subr.mxu0 0.0
    %1020 = vmatpush1.msra.mxu0 0.0
    %1021 = vmatprep.subr.mxu0 0.0
    %1022 = vmatpush1.msra.mxu0 0.0
    %1023 = vmatprep.subr.mxu0 0.0
    %1024 = vmatpush1.msra.mxu0 0.0
    %1025 = vmatprep.subr.mxu0 0.0
    %1026 = vmatpush1.msra.mxu0 0.0
    %1027 = vmatprep.subr.mxu0 0.0
    %1028 = vmatpush1.msra.mxu0 0.0
    %1029 = vmatprep.subr.mxu0 0.0
    %1030 = vmatpush1.msra.mxu0 0.0
    %1031 = vmatprep.subr.mxu0 0.0
    %1032 = vmatpush1.msra.mxu0 0.0
    %1033 = vmatprep.mubr.f32.mxu0 0.0
    %1034 = vmatmul.mubr.f32.gmra.mrb[0].mxu0 %v958
    %v1035 = vpop.f32.mrb[0].mxu0
    %v1036 = vadd.f32 %v940, %v1035
    %v1037 = vpop.f32.mrb[0].mxu0
    %1038 = vmatprep.mubr.f32.mxu0 0.0
    %1039 = vmatmul.mubr.f32.gmra.mrb[0].mxu0 %v961
    %v1040 = vpop.f32.mrb[0].mxu0
    %v1041 = vadd.f32 %v945, %v1040
    %v1042 = vpop.f32.mrb[0].mxu0
    %1043 = vmatprep.mubr.f32.mxu0 0.0
    %1044 = vmatmul.mubr.f32.gmra.mrb[0].mxu0 %v964
    %v1045 = vpop.f32.mrb[0].mxu0
    %v1046 = vadd.f32 %v950, %v1045
    %v1047 = vpop.f32.mrb[0].mxu0
    %1048 = vmatprep.mubr.f32.mxu0 0.0
    %1049 = vmatmul.mubr.f32.gmra.mrb[0].mxu0 %v967
    %v1050 = vpop.f32.mrb[0].mxu0
    %v1051 = vadd.f32 %v955, %v1050
    %v1052 = vpop.f32.mrb[0].mxu0
    %1053 = vdwg.mxu0
    %v1054 = vtanh.pop %v1036
    %v1055 = vtanh.pop %v1041
    %v1056 = vtanh.pop %v1046
    %v1057 = vtanh.pop %v1051
    %s1058 = scalar_lea.vmem %s4, 64
    %v1059 = vld [vmem:[%s1058] sm:$0xff]
    %v1060 = vld [vmem:[%s1058 + $0x8] sm:$0xff]
    %v1061 = vld [vmem:[%s1058 + $0x10] sm:$0xff]
    %v1062 = vld [vmem:[%s1058 + $0x18] sm:$0x3f]
    %1064 = vset.pattern.permute.xlu0 0
    %1065 = vperm.xlu0 %1064, %v1059
    %v1066 = vpop.permute.xlu0 %1065
    %1069 = vset.pattern.permute.xlu0 0
    %1070 = vperm.xlu0 %1069, %v1060
    %v1071 = vpop.permute.xlu0 %1070
    %1074 = vset.pattern.permute.xlu0 0
    %1075 = vperm.xlu0 %1074, %v1061
    %v1076 = vpop.permute.xlu0 %1075
    %1079 = vset.pattern.permute.xlu0 0
    %1080 = vperm.xlu0 %1079, %v1062
    %v1081 = vpop.permute.xlu0 %1080
    %v1083 = vmul.f32 %v1054, %v1066
    %v1084 = vmul.f32 %v1055, %v1071
    %v1085 = vmul.f32 %v1056, %v1076
    %v1086 = vmul.f32 %v1057, %v1081
    %v1087 = vadd.f32 %v1083, %v1084
    %v1088 = vadd.f32 %v1087, %v1085
    %v1089 = vsel %vm206, %v1086, 0.0
    %v1090 = vadd.f32 %v1088, %v1089
    %v1091 = vrot.slane %v1090, 4
    %v1092 = vadd.f32 %v1090, %v1091
    %v1093 = vrot.slane %v1092, 2
    %v1094 = vadd.f32 %v1092, %v1093
    %v1095 = vrot.slane %v1094, 1
    %v1096 = vadd.f32 %v1094, %v1095
    %s1097 = scalar_lea.vmem %s5, 48
    %v1098 = vld [vmem:[%s1097] sm:$0xff]
    %v1099 = vld [vmem:[%s1097 + $0x8] sm:$0xff]
    %v1100 = vld [vmem:[%s1097 + $0x10] sm:$0xf]
    %s1101 = scalar_lea.vmem %s6, 48
    %v1102 = vld [vmem:[%s1101] sm:$0xff]
    %v1103 = vld [vmem:[%s1101 + $0x8] sm:$0xff]
    %v1104 = vld [vmem:[%s1101 + $0x10] sm:$0xf]
    %1106 = vset.pattern.permute.xlu0 0
    %1107 = vperm.xlu0 %1106, %v1102
    %v1108 = vpop.permute.xlu0 %1107
    %1111 = vset.pattern.permute.xlu0 0
    %1112 = vperm.xlu0 %1111, %v1103
    %v1113 = vpop.permute.xlu0 %1112
    %1116 = vset.pattern.permute.xlu0 0
    %1117 = vperm.xlu0 %1116, %v1104
    %v1118 = vpop.permute.xlu0 %1117
    %v1121 = vsel %vm236, %v1098, 0
    %v1124 = vsel %vm236, %v1099, 0
    %v1127 = vsel %vm236, %v1100, 0
    %v1130 = vsel %vm206, %v1057, 0
    %1132 = vmatprep.subr.mxu0 0.0
    %1133 = vmatpush1.msra.mxu0 %v1054
    %1134 = vmatprep.subr.mxu0 0.0
    %1135 = vmatpush1.msra.mxu0 %v1055
    %1136 = vmatprep.subr.mxu0 0.0
    %1137 = vmatpush1.msra.mxu0 %v1056
    %1138 = vmatprep.subr.mxu0 0.0
    %1139 = vmatpush1.msra.mxu0 %v1130
    %1140 = vmatprep.subr.mxu0 0.0
    %1141 = vmatpush1.msra.mxu0 0.0
    %1142 = vmatprep.subr.mxu0 0.0
    %1143 = vmatpush1.msra.mxu0 0.0
    %1144 = vmatprep.subr.mxu0 0.0
    %1145 = vmatpush1.msra.mxu0 0.0
    %1146 = vmatprep.subr.mxu0 0.0
    %1147 = vmatpush1.msra.mxu0 0.0
    %1148 = vmatprep.subr.mxu0 0.0
    %1149 = vmatpush1.msra.mxu0 0.0
    %1150 = vmatprep.subr.mxu0 0.0
    %1151 = vmatpush1.msra.mxu0 0.0
    %1152 = vmatprep.subr.mxu0 0.0
    %1153 = vmatpush1.msra.mxu0 0.0
    %1154 = vmatprep.subr.mxu0 0.0
    %1155 = vmatpush1.msra.mxu0 0.0
    %1156 = vmatprep.subr.mxu0 0.0
    %1157 = vmatpush1.msra.mxu0 0.0
    %1158 = vmatprep.subr.mxu0 0.0
    %1159 = vmatpush1.msra.mxu0 0.0
    %1160 = vmatprep.subr.mxu0 0.0
    %1161 = vmatpush1.msra.mxu0 0.0
    %1162 = vmatprep.subr.mxu0 0.0
    %1163 = vmatpush1.msra.mxu0 0.0
    %1164 = vmatprep.subr.mxu0 0.0
    %1165 = vmatpush1.msra.mxu0 0.0
    %1166 = vmatprep.subr.mxu0 0.0
    %1167 = vmatpush1.msra.mxu0 0.0
    %1168 = vmatprep.subr.mxu0 0.0
    %1169 = vmatpush1.msra.mxu0 0.0
    %1170 = vmatprep.subr.mxu0 0.0
    %1171 = vmatpush1.msra.mxu0 0.0
    %1172 = vmatprep.subr.mxu0 0.0
    %1173 = vmatpush1.msra.mxu0 0.0
    %1174 = vmatprep.subr.mxu0 0.0
    %1175 = vmatpush1.msra.mxu0 0.0
    %1176 = vmatprep.subr.mxu0 0.0
    %1177 = vmatpush1.msra.mxu0 0.0
    %1178 = vmatprep.subr.mxu0 0.0
    %1179 = vmatpush1.msra.mxu0 0.0
    %1180 = vmatprep.subr.mxu0 0.0
    %1181 = vmatpush1.msra.mxu0 0.0
    %1182 = vmatprep.subr.mxu0 0.0
    %1183 = vmatpush1.msra.mxu0 0.0
    %1184 = vmatprep.subr.mxu0 0.0
    %1185 = vmatpush1.msra.mxu0 0.0
    %1186 = vmatprep.subr.mxu0 0.0
    %1187 = vmatpush1.msra.mxu0 0.0
    %1188 = vmatprep.subr.mxu0 0.0
    %1189 = vmatpush1.msra.mxu0 0.0
    %1190 = vmatprep.subr.mxu0 0.0
    %1191 = vmatpush1.msra.mxu0 0.0
    %1192 = vmatprep.subr.mxu0 0.0
    %1193 = vmatpush1.msra.mxu0 0.0
    %1194 = vmatprep.subr.mxu0 0.0
    %1195 = vmatpush1.msra.mxu0 0.0
    %1196 = vmatprep.mubr.f32.mxu0 0.0
    %1197 = vmatmul.mubr.f32.gmra.mrb[0].mxu0 %v1121
    %v1198 = vpop.f32.mrb[0].mxu0
    %v1199 = vadd.f32 %v1108, %v1198
    %v1200 = vpop.f32.mrb[0].mxu0
    %1201 = vmatprep.mubr.f32.mxu0 0.0
    %1202 = vmatmul.mubr.f32.gmra.mrb[0].mxu0 %v1124
    %v1203 = vpop.f32.mrb[0].mxu0
    %v1204 = vadd.f32 %v1113, %v1203
    %v1205 = vpop.f32.mrb[0].mxu0
    %1206 = vmatprep.mubr.f32.mxu0 0.0
    %1207 = vmatmul.mubr.f32.gmra.mrb[0].mxu0 %v1127
    %v1208 = vpop.f32.mrb[0].mxu0
    %v1209 = vadd.f32 %v1118, %v1208
    %v1210 = vpop.f32.mrb[0].mxu0
    %1211 = vdwg.mxu0
    %v1212 = vtanh.pop %v1199
    %v1213 = vtanh.pop %v1204
    %v1214 = vtanh.pop %v1209
    %s1215 = scalar_lea.vmem %s7, 32
    %v1216 = vld [vmem:[%s1215] sm:$0xff]
    %v1217 = vld [vmem:[%s1215 + $0x8] sm:$0x3]
    %s1218 = scalar_lea.vmem %s8, 32
    %v1219 = vld [vmem:[%s1218] sm:$0xff]
    %v1220 = vld [vmem:[%s1218 + $0x8] sm:$0x3]
    %1222 = vset.pattern.permute.xlu0 0
    %1223 = vperm.xlu0 %1222, %v1219
    %v1224 = vpop.permute.xlu0 %1223
    %1227 = vset.pattern.permute.xlu0 0
    %1228 = vperm.xlu0 %1227, %v1220
    %v1229 = vpop.permute.xlu0 %1228
    %v1232 = vsel %vm70, %v1216, 0
    %v1235 = vsel %vm70, %v1217, 0
    %v1238 = vsel %vm83, %v1214, 0
    %1240 = vmatprep.subr.mxu0 0.0
    %1241 = vmatpush1.msra.mxu0 %v1212
    %1242 = vmatprep.subr.mxu0 0.0
    %1243 = vmatpush1.msra.mxu0 %v1213
    %1244 = vmatprep.subr.mxu0 0.0
    %1245 = vmatpush1.msra.mxu0 %v1238
    %1246 = vmatprep.subr.mxu0 0.0
    %1247 = vmatpush1.msra.mxu0 0.0
    %1248 = vmatprep.subr.mxu0 0.0
    %1249 = vmatpush1.msra.mxu0 0.0
    %1250 = vmatprep.subr.mxu0 0.0
    %1251 = vmatpush1.msra.mxu0 0.0
    %1252 = vmatprep.subr.mxu0 0.0
    %1253 = vmatpush1.msra.mxu0 0.0
    %1254 = vmatprep.subr.mxu0 0.0
    %1255 = vmatpush1.msra.mxu0 0.0
    %1256 = vmatprep.subr.mxu0 0.0
    %1257 = vmatpush1.msra.mxu0 0.0
    %1258 = vmatprep.subr.mxu0 0.0
    %1259 = vmatpush1.msra.mxu0 0.0
    %1260 = vmatprep.subr.mxu0 0.0
    %1261 = vmatpush1.msra.mxu0 0.0
    %1262 = vmatprep.subr.mxu0 0.0
    %1263 = vmatpush1.msra.mxu0 0.0
    %1264 = vmatprep.subr.mxu0 0.0
    %1265 = vmatpush1.msra.mxu0 0.0
    %1266 = vmatprep.subr.mxu0 0.0
    %1267 = vmatpush1.msra.mxu0 0.0
    %1268 = vmatprep.subr.mxu0 0.0
    %1269 = vmatpush1.msra.mxu0 0.0
    %1270 = vmatprep.subr.mxu0 0.0
    %1271 = vmatpush1.msra.mxu0 0.0
    %1272 = vmatprep.subr.mxu0 0.0
    %1273 = vmatpush1.msra.mxu0 0.0
    %1274 = vmatprep.subr.mxu0 0.0
    %1275 = vmatpush1.msra.mxu0 0.0
    %1276 = vmatprep.subr.mxu0 0.0
    %1277 = vmatpush1.msra.mxu0 0.0
    %1278 = vmatprep.subr.mxu0 0.0
    %1279 = vmatpush1.msra.mxu0 0.0
    %1280 = vmatprep.subr.mxu0 0.0
    %1281 = vmatpush1.msra.mxu0 0.0
    %1282 = vmatprep.subr.mxu0 0.0
    %1283 = vmatpush1.msra.mxu0 0.0
    %1284 = vmatprep.subr.mxu0 0.0
    %1285 = vmatpush1.msra.mxu0 0.0
    %1286 = vmatprep.subr.mxu0 0.0
    %1287 = vmatpush1.msra.mxu0 0.0
    %1288 = vmatprep.subr.mxu0 0.0
    %1289 = vmatpush1.msra.mxu0 0.0
    %1290 = vmatprep.subr.mxu0 0.0
    %1291 = vmatpush1.msra.mxu0 0.0
    %1292 = vmatprep.subr.mxu0 0.0
    %1293 = vmatpush1.msra.mxu0 0.0
    %1294 = vmatprep.subr.mxu0 0.0
    %1295 = vmatpush1.msra.mxu0 0.0
    %1296 = vmatprep.subr.mxu0 0.0
    %1297 = vmatpush1.msra.mxu0 0.0
    %1298 = vmatprep.subr.mxu0 0.0
    %1299 = vmatpush1.msra.mxu0 0.0
    %1300 = vmatprep.subr.mxu0 0.0
    %1301 = vmatpush1.msra.mxu0 0.0
    %1302 = vmatprep.subr.mxu0 0.0
    %1303 = vmatpush1.msra.mxu0 0.0
    %1304 = vmatprep.mubr.f32.mxu0 0.0
    %1305 = vmatmul.mubr.f32.gmra.mrb[0].mxu0 %v1232
    %v1306 = vpop.f32.mrb[0].mxu0
    %v1307 = vadd.f32 %v1224, %v1306
    %v1308 = vpop.f32.mrb[0].mxu0
    %1309 = vmatprep.mubr.f32.mxu0 0.0
    %1310 = vmatmul.mubr.f32.gmra.mrb[0].mxu0 %v1235
    %v1311 = vpop.f32.mrb[0].mxu0
    %v1312 = vadd.f32 %v1229, %v1311
    %v1313 = vpop.f32.mrb[0].mxu0
    %1314 = vdwg.mxu0
    %v1315 = vtanh.pop %v1307
    %v1316 = vtanh.pop %v1312
    %s1317 = scalar_lea.vmem %s9, 32
    %v1318 = vld [vmem:[%s1317] sm:$0xff]
    %v1319 = vld [vmem:[%s1317 + $0x8] sm:$0x3]
    %1321 = vset.pattern.permute.xlu0 0
    %1322 = vperm.xlu0 %1321, %v1318
    %v1323 = vpop.permute.xlu0 %1322
    %1326 = vset.pattern.permute.xlu0 0
    %1327 = vperm.xlu0 %1326, %v1319
    %v1328 = vpop.permute.xlu0 %1327
    %v1330 = vmul.f32 %v1315, %v1323
    %v1331 = vmul.f32 %v1316, %v1328
    %v1332 = vsel %vm446, %v1331, 0.0
    %v1333 = vadd.f32 %v1330, %v1332
    %v1334 = vrot.slane %v1333, 4
    %v1335 = vadd.f32 %v1333, %v1334
    %v1336 = vrot.slane %v1335, 2
    %v1337 = vadd.f32 %v1335, %v1336
    %v1338 = vrot.slane %v1337, 1
    %v1339 = vadd.f32 %v1337, %v1338
    %v1340 = vadd.f32 %v1096, %v1339
    %s1341 = scalar_lea.vmem %s10, 2
    %v1342 = vld [vmem:[%s1341] sm:$0x1]
    %1344 = vset.pattern.permute.xlu0 0
    %1345 = vperm.xlu0 %1344, %v1342
    %v1346 = vpop.permute.xlu0 %1345
    %v1348 = vlaneseq
    %v1349 = vshrl.u32 %v1348, 7
    %v1350 = vsub.s32 0, %v1349
    %v1351 = vrot.slane %v1346, %v1350
    %v1352 = vadd.f32 %v1340, %v1351
    %s1353 = scalar_lea.vmem %s1, 96
    %v1354 = vld [vmem:[%s1353] sm:$0xff]
    %v1355 = vld [vmem:[%s1353 + $0x8] sm:$0xff]
    %v1356 = vld [vmem:[%s1353 + $0x10] sm:$0xff]
    %v1357 = vld [vmem:[%s1353 + $0x18] sm:$0x3f]
    %s1358 = scalar_lea.vmem %s3, 96
    %v1359 = vld [vmem:[%s1358] sm:$0xff]
    %v1360 = vld [vmem:[%s1358 + $0x8] sm:$0xff]
    %v1361 = vld [vmem:[%s1358 + $0x10] sm:$0xff]
    %v1362 = vld [vmem:[%s1358 + $0x18] sm:$0x3f]
    %1364 = vset.pattern.permute.xlu0 0
    %1365 = vperm.xlu0 %1364, %v1359
    %v1366 = vpop.permute.xlu0 %1365
    %1369 = vset.pattern.permute.xlu0 0
    %1370 = vperm.xlu0 %1369, %v1360
    %v1371 = vpop.permute.xlu0 %1370
    %1374 = vset.pattern.permute.xlu0 0
    %1375 = vperm.xlu0 %1374, %v1361
    %v1376 = vpop.permute.xlu0 %1375
    %1379 = vset.pattern.permute.xlu0 0
    %1380 = vperm.xlu0 %1379, %v1362
    %v1381 = vpop.permute.xlu0 %1380
    %v1384 = vsel %vm70, %v1354, 0
    %v1387 = vsel %vm70, %v1355, 0
    %v1390 = vsel %vm70, %v1356, 0
    %v1393 = vsel %vm70, %v1357, 0
    %1395 = vmatprep.subr.mxu0 0.0
    %1396 = vmatpush1.msra.mxu0 %v39
    %1397 = vmatprep.subr.mxu0 0.0
    %1398 = vmatpush1.msra.mxu0 %v40
    %1399 = vmatprep.subr.mxu0 0.0
    %1400 = vmatpush1.msra.mxu0 %v85
    %1401 = vmatprep.subr.mxu0 0.0
    %1402 = vmatpush1.msra.mxu0 0.0
    %1403 = vmatprep.subr.mxu0 0.0
    %1404 = vmatpush1.msra.mxu0 0.0
    %1405 = vmatprep.subr.mxu0 0.0
    %1406 = vmatpush1.msra.mxu0 0.0
    %1407 = vmatprep.subr.mxu0 0.0
    %1408 = vmatpush1.msra.mxu0 0.0
    %1409 = vmatprep.subr.mxu0 0.0
    %1410 = vmatpush1.msra.mxu0 0.0
    %1411 = vmatprep.subr.mxu0 0.0
    %1412 = vmatpush1.msra.mxu0 0.0
    %1413 = vmatprep.subr.mxu0 0.0
    %1414 = vmatpush1.msra.mxu0 0.0
    %1415 = vmatprep.subr.mxu0 0.0
    %1416 = vmatpush1.msra.mxu0 0.0
    %1417 = vmatprep.subr.mxu0 0.0
    %1418 = vmatpush1.msra.mxu0 0.0
    %1419 = vmatprep.subr.mxu0 0.0
    %1420 = vmatpush1.msra.mxu0 0.0
    %1421 = vmatprep.subr.mxu0 0.0
    %1422 = vmatpush1.msra.mxu0 0.0
    %1423 = vmatprep.subr.mxu0 0.0
    %1424 = vmatpush1.msra.mxu0 0.0
    %1425 = vmatprep.subr.mxu0 0.0
    %1426 = vmatpush1.msra.mxu0 0.0
    %1427 = vmatprep.subr.mxu0 0.0
    %1428 = vmatpush1.msra.mxu0 0.0
    %1429 = vmatprep.subr.mxu0 0.0
    %1430 = vmatpush1.msra.mxu0 0.0
    %1431 = vmatprep.subr.mxu0 0.0
    %1432 = vmatpush1.msra.mxu0 0.0
    %1433 = vmatprep.subr.mxu0 0.0
    %1434 = vmatpush1.msra.mxu0 0.0
    %1435 = vmatprep.subr.mxu0 0.0
    %1436 = vmatpush1.msra.mxu0 0.0
    %1437 = vmatprep.subr.mxu0 0.0
    %1438 = vmatpush1.msra.mxu0 0.0
    %1439 = vmatprep.subr.mxu0 0.0
    %1440 = vmatpush1.msra.mxu0 0.0
    %1441 = vmatprep.subr.mxu0 0.0
    %1442 = vmatpush1.msra.mxu0 0.0
    %1443 = vmatprep.subr.mxu0 0.0
    %1444 = vmatpush1.msra.mxu0 0.0
    %1445 = vmatprep.subr.mxu0 0.0
    %1446 = vmatpush1.msra.mxu0 0.0
    %1447 = vmatprep.subr.mxu0 0.0
    %1448 = vmatpush1.msra.mxu0 0.0
    %1449 = vmatprep.subr.mxu0 0.0
    %1450 = vmatpush1.msra.mxu0 0.0
    %1451 = vmatprep.subr.mxu0 0.0
    %1452 = vmatpush1.msra.mxu0 0.0
    %1453 = vmatprep.subr.mxu0 0.0
    %1454 = vmatpush1.msra.mxu0 0.0
    %1455 = vmatprep.subr.mxu0 0.0
    %1456 = vmatpush1.msra.mxu0 0.0
    %1457 = vmatprep.subr.mxu0 0.0
    %1458 = vmatpush1.msra.mxu0 0.0
    %1459 = vmatprep.mubr.f32.mxu0 0.0
    %1460 = vmatmul.mubr.f32.gmra.mrb[0].mxu0 %v1384
    %v1461 = vpop.f32.mrb[0].mxu0
    %v1462 = vadd.f32 %v1366, %v1461
    %v1463 = vpop.f32.mrb[0].mxu0
    %1464 = vmatprep.mubr.f32.mxu0 0.0
    %1465 = vmatmul.mubr.f32.gmra.mrb[0].mxu0 %v1387
    %v1466 = vpop.f32.mrb[0].mxu0
    %v1467 = vadd.f32 %v1371, %v1466
    %v1468 = vpop.f32.mrb[0].mxu0
    %1469 = vmatprep.mubr.f32.mxu0 0.0
    %1470 = vmatmul.mubr.f32.gmra.mrb[0].mxu0 %v1390
    %v1471 = vpop.f32.mrb[0].mxu0
    %v1472 = vadd.f32 %v1376, %v1471
    %v1473 = vpop.f32.mrb[0].mxu0
    %1474 = vmatprep.mubr.f32.mxu0 0.0
    %1475 = vmatmul.mubr.f32.gmra.mrb[0].mxu0 %v1393
    %v1476 = vpop.f32.mrb[0].mxu0
    %v1477 = vadd.f32 %v1381, %v1476
    %v1478 = vpop.f32.mrb[0].mxu0
    %1479 = vdwg.mxu0
    %s1480 = scalar_lea.vmem %s2, 192
    %v1481 = vld [vmem:[%s1480] sm:$0xff]
    %v1482 = vld [vmem:[%s1480 + $0x8] sm:$0xff]
    %v1483 = vld [vmem:[%s1480 + $0x10] sm:$0xff]
    %v1484 = vld [vmem:[%s1480 + $0x18] sm:$0x3f]
    %1486 = vset.pattern.permute.xlu0 0
    %1487 = vperm.xlu0 %1486, %v1481
    %v1488 = vpop.permute.xlu0 %1487
    %1491 = vset.pattern.permute.xlu0 0
    %1492 = vperm.xlu0 %1491, %v1482
    %v1493 = vpop.permute.xlu0 %1492
    %1496 = vset.pattern.permute.xlu0 0
    %1497 = vperm.xlu0 %1496, %v1483
    %v1498 = vpop.permute.xlu0 %1497
    %1501 = vset.pattern.permute.xlu0 0
    %1502 = vperm.xlu0 %1501, %v1484
    %v1503 = vpop.permute.xlu0 %1502
    %v1505 = vmul.f32 %v1488, %v1352
    %v1506 = vmul.f32 %v1493, %v1352
    %v1507 = vmul.f32 %v1498, %v1352
    %v1508 = vmul.f32 %v1503, %v1352
    %v1509 = vadd.f32 %v1462, %v1505
    %v1510 = vadd.f32 %v1467, %v1506
    %v1511 = vadd.f32 %v1472, %v1507
    %v1512 = vadd.f32 %v1477, %v1508
    %v1513 = vtanh.pop %v1509
    %v1514 = vtanh.pop %v1510
    %v1515 = vtanh.pop %v1511
    %v1516 = vtanh.pop %v1512
    %s1517 = scalar_lea.vmem %s4, 96
    %v1518 = vld [vmem:[%s1517] sm:$0xff]
    %v1519 = vld [vmem:[%s1517 + $0x8] sm:$0xff]
    %v1520 = vld [vmem:[%s1517 + $0x10] sm:$0xff]
    %v1521 = vld [vmem:[%s1517 + $0x18] sm:$0x3f]
    %1523 = vset.pattern.permute.xlu0 0
    %1524 = vperm.xlu0 %1523, %v1518
    %v1525 = vpop.permute.xlu0 %1524
    %1528 = vset.pattern.permute.xlu0 0
    %1529 = vperm.xlu0 %1528, %v1519
    %v1530 = vpop.permute.xlu0 %1529
    %1533 = vset.pattern.permute.xlu0 0
    %1534 = vperm.xlu0 %1533, %v1520
    %v1535 = vpop.permute.xlu0 %1534
    %1538 = vset.pattern.permute.xlu0 0
    %1539 = vperm.xlu0 %1538, %v1521
    %v1540 = vpop.permute.xlu0 %1539
    %v1542 = vmul.f32 %v1513, %v1525
    %v1543 = vmul.f32 %v1514, %v1530
    %v1544 = vmul.f32 %v1515, %v1535
    %v1545 = vmul.f32 %v1516, %v1540
    %v1546 = vadd.f32 %v1542, %v1543
    %v1547 = vadd.f32 %v1546, %v1544
    %v1548 = vsel %vm206, %v1545, 0.0
    %v1549 = vadd.f32 %v1547, %v1548
    %v1550 = vrot.slane %v1549, 4
    %v1551 = vadd.f32 %v1549, %v1550
    %v1552 = vrot.slane %v1551, 2
    %v1553 = vadd.f32 %v1551, %v1552
    %v1554 = vrot.slane %v1553, 1
    %v1555 = vadd.f32 %v1553, %v1554
    %s1556 = scalar_lea.vmem %s5, 72
    %v1557 = vld [vmem:[%s1556] sm:$0xff]
    %v1558 = vld [vmem:[%s1556 + $0x8] sm:$0xff]
    %v1559 = vld [vmem:[%s1556 + $0x10] sm:$0xf]
    %s1560 = scalar_lea.vmem %s6, 72
    %v1561 = vld [vmem:[%s1560] sm:$0xff]
    %v1562 = vld [vmem:[%s1560 + $0x8] sm:$0xff]
    %v1563 = vld [vmem:[%s1560 + $0x10] sm:$0xf]
    %1565 = vset.pattern.permute.xlu0 0
    %1566 = vperm.xlu0 %1565, %v1561
    %v1567 = vpop.permute.xlu0 %1566
    %1570 = vset.pattern.permute.xlu0 0
    %1571 = vperm.xlu0 %1570, %v1562
    %v1572 = vpop.permute.xlu0 %1571
    %1575 = vset.pattern.permute.xlu0 0
    %1576 = vperm.xlu0 %1575, %v1563
    %v1577 = vpop.permute.xlu0 %1576
    %v1580 = vsel %vm236, %v1557, 0
    %v1583 = vsel %vm236, %v1558, 0
    %v1586 = vsel %vm236, %v1559, 0
    %v1589 = vsel %vm206, %v1516, 0
    %1591 = vmatprep.subr.mxu0 0.0
    %1592 = vmatpush1.msra.mxu0 %v1513
    %1593 = vmatprep.subr.mxu0 0.0
    %1594 = vmatpush1.msra.mxu0 %v1514
    %1595 = vmatprep.subr.mxu0 0.0
    %1596 = vmatpush1.msra.mxu0 %v1515
    %1597 = vmatprep.subr.mxu0 0.0
    %1598 = vmatpush1.msra.mxu0 %v1589
    %1599 = vmatprep.subr.mxu0 0.0
    %1600 = vmatpush1.msra.mxu0 0.0
    %1601 = vmatprep.subr.mxu0 0.0
    %1602 = vmatpush1.msra.mxu0 0.0
    %1603 = vmatprep.subr.mxu0 0.0
    %1604 = vmatpush1.msra.mxu0 0.0
    %1605 = vmatprep.subr.mxu0 0.0
    %1606 = vmatpush1.msra.mxu0 0.0
    %1607 = vmatprep.subr.mxu0 0.0
    %1608 = vmatpush1.msra.mxu0 0.0
    %1609 = vmatprep.subr.mxu0 0.0
    %1610 = vmatpush1.msra.mxu0 0.0
    %1611 = vmatprep.subr.mxu0 0.0
    %1612 = vmatpush1.msra.mxu0 0.0
    %1613 = vmatprep.subr.mxu0 0.0
    %1614 = vmatpush1.msra.mxu0 0.0
    %1615 = vmatprep.subr.mxu0 0.0
    %1616 = vmatpush1.msra.mxu0 0.0
    %1617 = vmatprep.subr.mxu0 0.0
    %1618 = vmatpush1.msra.mxu0 0.0
    %1619 = vmatprep.subr.mxu0 0.0
    %1620 = vmatpush1.msra.mxu0 0.0
    %1621 = vmatprep.subr.mxu0 0.0
    %1622 = vmatpush1.msra.mxu0 0.0
    %1623 = vmatprep.subr.mxu0 0.0
    %1624 = vmatpush1.msra.mxu0 0.0
    %1625 = vmatprep.subr.mxu0 0.0
    %1626 = vmatpush1.msra.mxu0 0.0
    %1627 = vmatprep.subr.mxu0 0.0
    %1628 = vmatpush1.msra.mxu0 0.0
    %1629 = vmatprep.subr.mxu0 0.0
    %1630 = vmatpush1.msra.mxu0 0.0
    %1631 = vmatprep.subr.mxu0 0.0
    %1632 = vmatpush1.msra.mxu0 0.0
    %1633 = vmatprep.subr.mxu0 0.0
    %1634 = vmatpush1.msra.mxu0 0.0
    %1635 = vmatprep.subr.mxu0 0.0
    %1636 = vmatpush1.msra.mxu0 0.0
    %1637 = vmatprep.subr.mxu0 0.0
    %1638 = vmatpush1.msra.mxu0 0.0
    %1639 = vmatprep.subr.mxu0 0.0
    %1640 = vmatpush1.msra.mxu0 0.0
    %1641 = vmatprep.subr.mxu0 0.0
    %1642 = vmatpush1.msra.mxu0 0.0
    %1643 = vmatprep.subr.mxu0 0.0
    %1644 = vmatpush1.msra.mxu0 0.0
    %1645 = vmatprep.subr.mxu0 0.0
    %1646 = vmatpush1.msra.mxu0 0.0
    %1647 = vmatprep.subr.mxu0 0.0
    %1648 = vmatpush1.msra.mxu0 0.0
    %1649 = vmatprep.subr.mxu0 0.0
    %1650 = vmatpush1.msra.mxu0 0.0
    %1651 = vmatprep.subr.mxu0 0.0
    %1652 = vmatpush1.msra.mxu0 0.0
    %1653 = vmatprep.subr.mxu0 0.0
    %1654 = vmatpush1.msra.mxu0 0.0
    %1655 = vmatprep.mubr.f32.mxu0 0.0
    %1656 = vmatmul.mubr.f32.gmra.mrb[0].mxu0 %v1580
    %v1657 = vpop.f32.mrb[0].mxu0
    %v1658 = vadd.f32 %v1567, %v1657
    %v1659 = vpop.f32.mrb[0].mxu0
    %1660 = vmatprep.mubr.f32.mxu0 0.0
    %1661 = vmatmul.mubr.f32.gmra.mrb[0].mxu0 %v1583
    %v1662 = vpop.f32.mrb[0].mxu0
    %v1663 = vadd.f32 %v1572, %v1662
    %v1664 = vpop.f32.mrb[0].mxu0
    %1665 = vmatprep.mubr.f32.mxu0 0.0
    %1666 = vmatmul.mubr.f32.gmra.mrb[0].mxu0 %v1586
    %v1667 = vpop.f32.mrb[0].mxu0
    %v1668 = vadd.f32 %v1577, %v1667
    %v1669 = vpop.f32.mrb[0].mxu0
    %1670 = vdwg.mxu0
    %v1671 = vtanh.pop %v1658
    %v1672 = vtanh.pop %v1663
    %v1673 = vtanh.pop %v1668
    %s1674 = scalar_lea.vmem %s7, 48
    %v1675 = vld [vmem:[%s1674] sm:$0xff]
    %v1676 = vld [vmem:[%s1674 + $0x8] sm:$0x3]
    %s1677 = scalar_lea.vmem %s8, 48
    %v1678 = vld [vmem:[%s1677] sm:$0xff]
    %v1679 = vld [vmem:[%s1677 + $0x8] sm:$0x3]
    %1681 = vset.pattern.permute.xlu0 0
    %1682 = vperm.xlu0 %1681, %v1678
    %v1683 = vpop.permute.xlu0 %1682
    %1686 = vset.pattern.permute.xlu0 0
    %1687 = vperm.xlu0 %1686, %v1679
    %v1688 = vpop.permute.xlu0 %1687
    %v1691 = vsel %vm70, %v1675, 0
    %v1694 = vsel %vm70, %v1676, 0
    %v1697 = vsel %vm83, %v1673, 0
    %1699 = vmatprep.subr.mxu0 0.0
    %1700 = vmatpush1.msra.mxu0 %v1671
    %1701 = vmatprep.subr.mxu0 0.0
    %1702 = vmatpush1.msra.mxu0 %v1672
    %1703 = vmatprep.subr.mxu0 0.0
    %1704 = vmatpush1.msra.mxu0 %v1697
    %1705 = vmatprep.subr.mxu0 0.0
    %1706 = vmatpush1.msra.mxu0 0.0
    %1707 = vmatprep.subr.mxu0 0.0
    %1708 = vmatpush1.msra.mxu0 0.0
    %1709 = vmatprep.subr.mxu0 0.0
    %1710 = vmatpush1.msra.mxu0 0.0
    %1711 = vmatprep.subr.mxu0 0.0
    %1712 = vmatpush1.msra.mxu0 0.0
    %1713 = vmatprep.subr.mxu0 0.0
    %1714 = vmatpush1.msra.mxu0 0.0
    %1715 = vmatprep.subr.mxu0 0.0
    %1716 = vmatpush1.msra.mxu0 0.0
    %1717 = vmatprep.subr.mxu0 0.0
    %1718 = vmatpush1.msra.mxu0 0.0
    %1719 = vmatprep.subr.mxu0 0.0
    %1720 = vmatpush1.msra.mxu0 0.0
    %1721 = vmatprep.subr.mxu0 0.0
    %1722 = vmatpush1.msra.mxu0 0.0
    %1723 = vmatprep.subr.mxu0 0.0
    %1724 = vmatpush1.msra.mxu0 0.0
    %1725 = vmatprep.subr.mxu0 0.0
    %1726 = vmatpush1.msra.mxu0 0.0
    %1727 = vmatprep.subr.mxu0 0.0
    %1728 = vmatpush1.msra.mxu0 0.0
    %1729 = vmatprep.subr.mxu0 0.0
    %1730 = vmatpush1.msra.mxu0 0.0
    %1731 = vmatprep.subr.mxu0 0.0
    %1732 = vmatpush1.msra.mxu0 0.0
    %1733 = vmatprep.subr.mxu0 0.0
    %1734 = vmatpush1.msra.mxu0 0.0
    %1735 = vmatprep.subr.mxu0 0.0
    %1736 = vmatpush1.msra.mxu0 0.0
    %1737 = vmatprep.subr.mxu0 0.0
    %1738 = vmatpush1.msra.mxu0 0.0
    %1739 = vmatprep.subr.mxu0 0.0
    %1740 = vmatpush1.msra.mxu0 0.0
    %1741 = vmatprep.subr.mxu0 0.0
    %1742 = vmatpush1.msra.mxu0 0.0
    %1743 = vmatprep.subr.mxu0 0.0
    %1744 = vmatpush1.msra.mxu0 0.0
    %1745 = vmatprep.subr.mxu0 0.0
    %1746 = vmatpush1.msra.mxu0 0.0
    %1747 = vmatprep.subr.mxu0 0.0
    %1748 = vmatpush1.msra.mxu0 0.0
    %1749 = vmatprep.subr.mxu0 0.0
    %1750 = vmatpush1.msra.mxu0 0.0
    %1751 = vmatprep.subr.mxu0 0.0
    %1752 = vmatpush1.msra.mxu0 0.0
    %1753 = vmatprep.subr.mxu0 0.0
    %1754 = vmatpush1.msra.mxu0 0.0
    %1755 = vmatprep.subr.mxu0 0.0
    %1756 = vmatpush1.msra.mxu0 0.0
    %1757 = vmatprep.subr.mxu0 0.0
    %1758 = vmatpush1.msra.mxu0 0.0
    %1759 = vmatprep.subr.mxu0 0.0
    %1760 = vmatpush1.msra.mxu0 0.0
    %1761 = vmatprep.subr.mxu0 0.0
    %1762 = vmatpush1.msra.mxu0 0.0
    %1763 = vmatprep.mubr.f32.mxu0 0.0
    %1764 = vmatmul.mubr.f32.gmra.mrb[0].mxu0 %v1691
    %v1765 = vpop.f32.mrb[0].mxu0
    %v1766 = vadd.f32 %v1683, %v1765
    %v1767 = vpop.f32.mrb[0].mxu0
    %1768 = vmatprep.mubr.f32.mxu0 0.0
    %1769 = vmatmul.mubr.f32.gmra.mrb[0].mxu0 %v1694
    %v1770 = vpop.f32.mrb[0].mxu0
    %v1771 = vadd.f32 %v1688, %v1770
    %v1772 = vpop.f32.mrb[0].mxu0
    %1773 = vdwg.mxu0
    %v1774 = vtanh.pop %v1766
    %v1775 = vtanh.pop %v1771
    %s1776 = scalar_lea.vmem %s9, 48
    %v1777 = vld [vmem:[%s1776] sm:$0xff]
    %v1778 = vld [vmem:[%s1776 + $0x8] sm:$0x3]
    %1780 = vset.pattern.permute.xlu0 0
    %1781 = vperm.xlu0 %1780, %v1777
    %v1782 = vpop.permute.xlu0 %1781
    %1785 = vset.pattern.permute.xlu0 0
    %1786 = vperm.xlu0 %1785, %v1778
    %v1787 = vpop.permute.xlu0 %1786
    %v1789 = vmul.f32 %v1774, %v1782
    %v1790 = vmul.f32 %v1775, %v1787
    %v1791 = vsel %vm446, %v1790, 0.0
    %v1792 = vadd.f32 %v1789, %v1791
    %v1793 = vrot.slane %v1792, 4
    %v1794 = vadd.f32 %v1792, %v1793
    %v1795 = vrot.slane %v1794, 2
    %v1796 = vadd.f32 %v1794, %v1795
    %v1797 = vrot.slane %v1796, 1
    %v1798 = vadd.f32 %v1796, %v1797
    %v1799 = vadd.f32 %v1555, %v1798
    %s1800 = scalar_lea.vmem %s10, 3
    %v1801 = vld [vmem:[%s1800] sm:$0x1]
    %1803 = vset.pattern.permute.xlu0 0
    %1804 = vperm.xlu0 %1803, %v1801
    %v1805 = vpop.permute.xlu0 %1804
    %v1807 = vlaneseq
    %v1808 = vshrl.u32 %v1807, 7
    %v1809 = vsub.s32 0, %v1808
    %v1810 = vrot.slane %v1805, %v1809
    %v1811 = vadd.f32 %v1799, %v1810
    %v1812 = vadd.f32 %v926, %v1811
    %v1813 = vmul.f32 %v1812, 0.5
    %1814 = vst [vmem:[#allocation2] sm:$0x1] %v1813
    // Predicated region
    $region46: #{tpu_custom_call.1} parent=1 // pred_check
      _
    $region47: #{tpu_custom_call.1} parent=1 // pred_check_branch
      %1816 = sbr.rel (0) target = $region49
    $region48: #{tpu_custom_call.1} parent=1 // pred_region
      %s1818 = ssub.s32 16, 16
      %1819 = vsyncadd [#allocation3], %s1818
      %s1821 = sshll.u32 [#allocation2], 4
      %s1822 = int_to_ptr.vmem [resolvable:$true] %s1821
      %1824 = dma.vmem_to_hbm [thread:$0]  %s1822, 16, %s11, [#allocation3]
    $region49: #{tpu_custom_call.1} parent=1 // pred_fallthru
      _
    // Predicated region
    $region50: #{tpu_custom_call.1} parent=1 // pred_check
      _
    $region51: #{tpu_custom_call.1} parent=1 // pred_check_branch
      %1826 = sbr.rel (0) target = $region53
    $region52: #{tpu_custom_call.1} parent=1 // pred_region
      %1827 = dma.done [#allocation3], 16
    $region53: #{tpu_custom_call.1} parent=1 // pred_fallthru
      _
    %1828 = vsyncpa [#allocation3], 1

</llo_original>
